<compile_context>
chip_gen: v7x
topology: tpu7x:2x2x1
jax: 0.10.0
libtpu: 0.0.40
codegen_flags: <defaults>
</compile_context>

<pallas_src>
import functools

import jax
import jax.numpy as jnp
from jax.experimental import pallas as pl
from jax.experimental.pallas import tpu as pltpu

# ----- small, module-consistent sizes -----------------------------------
EMB_SIZE = 32          # emb_size of each PositionalEmbedding (must be even)
HALF = EMB_SIZE // 2
HIDDEN = 32            # hidden_size
HIDDEN_LAYERS = 3      # number of residual Blocks
OUT_DIM = 2
INPUT_SCALE = 25.0     # input_mlp1 / input_mlp2 scale
TIME_SCALE = 1.0       # time_mlp scale
CONCAT = 3 * EMB_SIZE  # concat_size

_INV_SQRT2 = 0.7071067811865476


def _gelu_prescaled(u):
    # GELU(v) with v = sqrt(2)*u, i.e. 1/sqrt(2) already folded into W,b:
    #   GELU(v) = 0.5*v*(1+erf(v/sqrt(2))) = INV_SQRT2 * u * (1 + erf(u))
    return _INV_SQRT2 * u * (1.0 + jax.lax.erf(u))


def mlp_kernel(xt_ref, fin_ref, ft_ref,
               w0s_ref, w0c_ref, b0_ref,
               w1_ref, b1_ref, w2_ref, b2_ref, w3_ref, b3_ref,
               wo_ref, bo_ref,
               o_ref):
    dot = functools.partial(jnp.dot, preferred_element_type=jnp.float32)

    # single (3, TILE_B) load; slice rows from the loaded value
    xt = xt_ref[...]
    x0 = xt[0:1, :]                      # (1, TILE_B)
    x1 = xt[1:2, :]
    tt = xt[2:3, :]

    fin = fin_ref[...]                   # (HALF, 1) = 25 * freqs (scale folded in)
    ft = ft_ref[...]                     # (HALF, 1) = 1  * freqs

    # stacked argument block -> a single sin and a single cos over dense vregs
    arg = jnp.concatenate([fin * x0, fin * x1, ft * tt], axis=0)   # (3*HALF, TILE_B)
    s = jnp.sin(arg)
    c = jnp.cos(arg)

    # layer 0: W0 pre-split into sin/cos halves (no (96,TILE_B) concat);
    # 1/sqrt(2) already folded into w0s/w0c/b0.
    u = dot(w0s_ref[...], s) + dot(w0c_ref[...], c) + b0_ref[...]  # (HIDDEN, TILE_B)
    h = _gelu_prescaled(u)

    # residual Blocks: x + GELU(Linear(x))   (weights/biases pre-scaled by 1/sqrt(2))
    for w_ref, b_ref in ((w1_ref, b1_ref), (w2_ref, b2_ref), (w3_ref, b3_ref)):
        h = h + _gelu_prescaled(dot(w_ref[...], h) + b_ref[...])

    # final Linear(hidden, 2): lane-dense (OUT_DIM, TILE_B) store
    o_ref[...] = dot(wo_ref[...], h) + bo_ref[...]


# ----- constants / parameter init (PyTorch-native orientation) ------------
def make_freqs():
    # exp(-log(10000)/(half-1) * arange(half)), shape (HALF,)
    k = jnp.arange(HALF, dtype=jnp.float32)
    return jnp.exp(-jnp.log(10000.0) / (HALF - 1) * k)


def init_params(key):
    """PyTorch-native nn.Linear params: weight (out, in), bias (out,)."""
    def linear(kw, kb, fan_in, fan_out):
        bound = 1.0 / float(fan_in) ** 0.5
        w = jax.random.uniform(kw, (fan_out, fan_in), jnp.float32, -bound, bound)
        b = jax.random.uniform(kb, (fan_out,), jnp.float32, -bound, bound)
        return w, b

    n_linears = 2 + HIDDEN_LAYERS
    keys = jax.random.split(key, 2 * n_linears)
    params = [linear(keys[0], keys[1], CONCAT, HIDDEN)]
    for i in range(HIDDEN_LAYERS):
        params.append(linear(keys[2 + 2 * i], keys[3 + 2 * i], HIDDEN, HIDDEN))
    params.append(linear(keys[2 + 2 * HIDDEN_LAYERS],
                         keys[3 + 2 * HIDDEN_LAYERS], HIDDEN, OUT_DIM))
    return params


def prepare_params(params):
    """One-time prep:
       * split W0 into sin / cos column halves (grouped [x0|x1|t]),
       * fold 1/sqrt(2) into every pre-GELU weight and bias,
       * reshape biases to (out, 1) columns,
       * fold the embedding scales into the frequency constants."""
    w0, b0 = params[0]
    # original column blocks: [sin1, cos1, sin2, cos2, sin_t, cos_t]
    w0s = jnp.concatenate([w0[:, blk * HALF:(blk + 1) * HALF] for blk in (0, 2, 4)],
                          axis=1) * _INV_SQRT2
    w0c = jnp.concatenate([w0[:, blk * HALF:(blk + 1) * HALF] for blk in (1, 3, 5)],
                          axis=1) * _INV_SQRT2
    flat = [w0s, w0c, (_INV_SQRT2 * b0).reshape(-1, 1)]
    for w, b in params[1:-1]:
        flat += [_INV_SQRT2 * w, (_INV_SQRT2 * b).reshape(-1, 1)]
    wo, bo = params[-1]                               # final layer NOT scaled
    flat += [wo, bo.reshape(-1, 1)]

    base = make_freqs()
    fin = (INPUT_SCALE * base).reshape(HALF, 1)
    ft = (TIME_SCALE * base).reshape(HALF, 1)
    return fin, ft, tuple(flat)


# ----- wrapper ------------------------------------------------------------
def _round_up(n, m):
    return ((n + m - 1) // m) * m


def _const_spec(shape):
    # full-array block, same block index every grid step -> stays VMEM-resident
    return pl.BlockSpec(shape, lambda i: (0, 0))


def mlp_forward(x, t, prepared, *, tile_b=None):
    fin, ft, flat = prepared
    B = x.shape[0]

    b128 = _round_up(max(B, 1), 128)          # minimal lane-padded batch
    if tile_b is None:
        tile_b = min(4096, b128)
        # keep >= 2 parallel blocks so v7x's second TensorCore gets work
        if b128 >= 256:
            tile_b = min(tile_b, _round_up(pl.cdiv(b128, 2), 128))
    tile_b = _round_up(min(tile_b, b128), 128)
    B_pad = _round_up(b128, tile_b)
    n_blocks = B_pad // tile_b

    # feature-major (3, B_pad) input slab: rows = [x0, x1, t]; zero-padded tail
    xt = jnp.stack([x[:, 0].astype(jnp.float32),
                    x[:, 1].astype(jnp.float32),
                    t.astype(jnp.float32)], axis=0)          # (3, B)
    xt = jnp.pad(xt, ((0, 0), (0, B_pad - B)))

    in_specs = [pl.BlockSpec((3, tile_b), lambda i: (0, i)),
                _const_spec((HALF, 1)),
                _const_spec((HALF, 1))]
    for arr in flat:
        in_specs.append(_const_spec(arr.shape))

    out = pl.pallas_call(
        mlp_kernel,
        out_shape=jax.ShapeDtypeStruct((OUT_DIM, B_pad), jnp.float32),
        grid=(n_blocks,),
        in_specs=in_specs,
        out_specs=pl.BlockSpec((OUT_DIM, tile_b), lambda i: (0, i)),
        compiler_params=pltpu.CompilerParams(
            dimension_semantics=("parallel",)),
    )(xt, fin, ft, *flat)

    return out[:, :B].T                       # back to PyTorch (B, 2) layout


# ----- pure-JAX reference (for a correctness check) -----------------------
def mlp_reference(x, t, params):
    freqs = make_freqs()

    def emb(v, scale):
        a = (v * scale)[:, None] * freqs[None, :]
        return jnp.concatenate([jnp.sin(a), jnp.cos(a)], axis=-1)

    h = jnp.concatenate([emb(x[:, 0], INPUT_SCALE),
                         emb(x[:, 1], INPUT_SCALE),
                         emb(t, TIME_SCALE)], axis=-1)
    w0, b0 = params[0]
    h = jax.nn.gelu(h @ w0.T + b0, approximate=False)
    for w, b in params[1:-1]:
        h = h + jax.nn.gelu(h @ w.T + b, approximate=False)
    wN, bN = params[-1]
    return h @ wN.T + bN


if __name__ == "__main__":
    key = jax.random.PRNGKey(0)
    kp = jax.random.fold_in(key, 123)

    params = init_params(kp)
    prepared = prepare_params(params)

    # B=8: tiny single-block path; B=300: padded multi-block (n_blocks >= 2) path
    for B in (8, 300):
        kx, kt = jax.random.split(jax.random.fold_in(key, B))
        x = jax.random.normal(kx, (B, 2), dtype=jnp.float32)
        t = jax.random.uniform(kt, (B,), dtype=jnp.float32)

        out = jax.block_until_ready(mlp_forward(x, t, prepared))
        ref = mlp_reference(x, t, params)

        assert out.shape == (B, OUT_DIM)
        assert jnp.allclose(out, ref, atol=3e-3, rtol=3e-3), (B, out, ref)

    print("KERNEL_OK")
</pallas_src>

<mosaic_0001>
module attributes {stable_mosaic.version = 11 : i64} {
  func.func @mlp_kernel(%arg0: i32, %arg1: memref<3x128xf32, #tpu.memory_space<vmem>>, %arg2: memref<16x1xf32, #tpu.memory_space<vmem>>, %arg3: memref<16x1xf32, #tpu.memory_space<vmem>>, %arg4: memref<32x48xf32, #tpu.memory_space<vmem>>, %arg5: memref<32x48xf32, #tpu.memory_space<vmem>>, %arg6: memref<32x1xf32, #tpu.memory_space<vmem>>, %arg7: memref<32x32xf32, #tpu.memory_space<vmem>>, %arg8: memref<32x1xf32, #tpu.memory_space<vmem>>, %arg9: memref<32x32xf32, #tpu.memory_space<vmem>>, %arg10: memref<32x1xf32, #tpu.memory_space<vmem>>, %arg11: memref<32x32xf32, #tpu.memory_space<vmem>>, %arg12: memref<32x1xf32, #tpu.memory_space<vmem>>, %arg13: memref<2x32xf32, #tpu.memory_space<vmem>>, %arg14: memref<2x1xf32, #tpu.memory_space<vmem>>, %arg15: memref<2x128xf32, #tpu.memory_space<vmem>>) attributes {dimension_semantics = [#tpu.dimension_semantics<parallel>], iteration_bounds = array<i64: 1>, scalar_prefetch = 0 : i64, scratch_operands = 0 : i64, tpu.core_type = #tpu.core_type<tc>, window_params = [{transform_indices = @transform_0, window_bounds = array<i64: 3, 128>}, {pipeline_mode = #tpu.pipeline_mode<synchronous>, transform_indices = @transform_1, window_bounds = array<i64: 16, 1>}, {pipeline_mode = #tpu.pipeline_mode<synchronous>, transform_indices = @transform_2, window_bounds = array<i64: 16, 1>}, {pipeline_mode = #tpu.pipeline_mode<synchronous>, transform_indices = @transform_3, window_bounds = array<i64: 32, 48>}, {pipeline_mode = #tpu.pipeline_mode<synchronous>, transform_indices = @transform_4, window_bounds = array<i64: 32, 48>}, {pipeline_mode = #tpu.pipeline_mode<synchronous>, transform_indices = @transform_5, window_bounds = array<i64: 32, 1>}, {pipeline_mode = #tpu.pipeline_mode<synchronous>, transform_indices = @transform_6, window_bounds = array<i64: 32, 32>}, {pipeline_mode = #tpu.pipeline_mode<synchronous>, transform_indices = @transform_7, window_bounds = array<i64: 32, 1>}, {pipeline_mode = #tpu.pipeline_mode<synchronous>, transform_indices = @transform_8, window_bounds = array<i64: 32, 32>}, {pipeline_mode = #tpu.pipeline_mode<synchronous>, transform_indices = @transform_9, window_bounds = array<i64: 32, 1>}, {pipeline_mode = #tpu.pipeline_mode<synchronous>, transform_indices = @transform_10, window_bounds = array<i64: 32, 32>}, {pipeline_mode = #tpu.pipeline_mode<synchronous>, transform_indices = @transform_11, window_bounds = array<i64: 32, 1>}, {pipeline_mode = #tpu.pipeline_mode<synchronous>, transform_indices = @transform_12, window_bounds = array<i64: 2, 32>}, {pipeline_mode = #tpu.pipeline_mode<synchronous>, transform_indices = @transform_13, window_bounds = array<i64: 2, 1>}, {transform_indices = @transform_14, window_bounds = array<i64: 2, 128>}]} {
    %c0 = arith.constant 0 : index
    %c0_0 = arith.constant 0 : index
    %0 = vector.load %arg1[%c0, %c0_0] : memref<3x128xf32, #tpu.memory_space<vmem>>, vector<3x128xf32>
    %1 = vector.extract_strided_slice %0 {offsets = [0, 0], sizes = [1, 128], strides = [1, 1]} : vector<3x128xf32> to vector<1x128xf32>
    %2 = vector.extract_strided_slice %0 {offsets = [1, 0], sizes = [1, 128], strides = [1, 1]} : vector<3x128xf32> to vector<1x128xf32>
    %3 = vector.extract_strided_slice %0 {offsets = [2, 0], sizes = [1, 128], strides = [1, 1]} : vector<3x128xf32> to vector<1x128xf32>
    %c0_1 = arith.constant 0 : index
    %c0_2 = arith.constant 0 : index
    %4 = vector.load %arg2[%c0_1, %c0_2] : memref<16x1xf32, #tpu.memory_space<vmem>>, vector<16x1xf32>
    %c0_3 = arith.constant 0 : index
    %c0_4 = arith.constant 0 : index
    %5 = vector.load %arg3[%c0_3, %c0_4] : memref<16x1xf32, #tpu.memory_space<vmem>>, vector<16x1xf32>
    %6 = vector.broadcast %4 : vector<16x1xf32> to vector<16x128xf32>
    %7 = vector.broadcast %1 : vector<1x128xf32> to vector<16x128xf32>
    %8 = arith.mulf %6, %7 : vector<16x128xf32>
    %9 = vector.broadcast %4 : vector<16x1xf32> to vector<16x128xf32>
    %10 = vector.broadcast %2 : vector<1x128xf32> to vector<16x128xf32>
    %11 = arith.mulf %9, %10 : vector<16x128xf32>
    %12 = vector.broadcast %5 : vector<16x1xf32> to vector<16x128xf32>
    %13 = vector.broadcast %3 : vector<1x128xf32> to vector<16x128xf32>
    %14 = arith.mulf %12, %13 : vector<16x128xf32>
    %15 = tpu.concatenate %8, %11, %14 in 0 : vector<16x128xf32>, vector<16x128xf32>, vector<16x128xf32> -> vector<48x128xf32>
    %16 = math.sin %15 : vector<48x128xf32>
    %17 = math.cos %15 : vector<48x128xf32>
    %c0_5 = arith.constant 0 : index
    %c0_6 = arith.constant 0 : index
    %18 = vector.load %arg4[%c0_5, %c0_6] : memref<32x48xf32, #tpu.memory_space<vmem>>, vector<32x48xf32>
    %cst = arith.constant dense<0.000000e+00> : vector<32x128xf32>
    %19 = tpu.matmul %18, %16, %cst {dimension_numbers = #tpu.dot_dimension_numbers<[1], [0], [0], [1], [0, 0, 1, 1], [], []>} : vector<32x48xf32>, vector<48x128xf32>, vector<32x128xf32> -> vector<32x128xf32>
    %c0_7 = arith.constant 0 : index
    %c0_8 = arith.constant 0 : index
    %20 = vector.load %arg5[%c0_7, %c0_8] : memref<32x48xf32, #tpu.memory_space<vmem>>, vector<32x48xf32>
    %cst_9 = arith.constant dense<0.000000e+00> : vector<32x128xf32>
    %21 = tpu.matmul %20, %17, %cst_9 {dimension_numbers = #tpu.dot_dimension_numbers<[1], [0], [0], [1], [0, 0, 1, 1], [], []>} : vector<32x48xf32>, vector<48x128xf32>, vector<32x128xf32> -> vector<32x128xf32>
    %22 = arith.addf %19, %21 : vector<32x128xf32>
    %c0_10 = arith.constant 0 : index
    %c0_11 = arith.constant 0 : index
    %23 = vector.load %arg6[%c0_10, %c0_11] : memref<32x1xf32, #tpu.memory_space<vmem>>, vector<32x1xf32>
    %24 = vector.broadcast %23 : vector<32x1xf32> to vector<32x128xf32>
    %25 = arith.addf %22, %24 : vector<32x128xf32>
    %cst_12 = arith.constant 0.707106769 : f32
    %26 = vector.broadcast %cst_12 : f32 to vector<32x128xf32>
    %27 = arith.mulf %26, %25 : vector<32x128xf32>
    %28 = math.erf %25 : vector<32x128xf32>
    %cst_13 = arith.constant 1.000000e+00 : f32
    %29 = vector.broadcast %cst_13 : f32 to vector<32x128xf32>
    %30 = arith.addf %29, %28 : vector<32x128xf32>
    %31 = arith.mulf %27, %30 : vector<32x128xf32>
    %c0_14 = arith.constant 0 : index
    %c0_15 = arith.constant 0 : index
    %32 = vector.load %arg7[%c0_14, %c0_15] : memref<32x32xf32, #tpu.memory_space<vmem>>, vector<32x32xf32>
    %cst_16 = arith.constant dense<0.000000e+00> : vector<32x128xf32>
    %33 = tpu.matmul %32, %31, %cst_16 {dimension_numbers = #tpu.dot_dimension_numbers<[1], [0], [0], [1], [0, 0, 1, 1], [], []>} : vector<32x32xf32>, vector<32x128xf32>, vector<32x128xf32> -> vector<32x128xf32>
    %c0_17 = arith.constant 0 : index
    %c0_18 = arith.constant 0 : index
    %34 = vector.load %arg8[%c0_17, %c0_18] : memref<32x1xf32, #tpu.memory_space<vmem>>, vector<32x1xf32>
    %35 = vector.broadcast %34 : vector<32x1xf32> to vector<32x128xf32>
    %36 = arith.addf %33, %35 : vector<32x128xf32>
    %cst_19 = arith.constant 0.707106769 : f32
    %37 = vector.broadcast %cst_19 : f32 to vector<32x128xf32>
    %38 = arith.mulf %37, %36 : vector<32x128xf32>
    %39 = math.erf %36 : vector<32x128xf32>
    %cst_20 = arith.constant 1.000000e+00 : f32
    %40 = vector.broadcast %cst_20 : f32 to vector<32x128xf32>
    %41 = arith.addf %40, %39 : vector<32x128xf32>
    %42 = arith.mulf %38, %41 : vector<32x128xf32>
    %43 = arith.addf %31, %42 : vector<32x128xf32>
    %c0_21 = arith.constant 0 : index
    %c0_22 = arith.constant 0 : index
    %44 = vector.load %arg9[%c0_21, %c0_22] : memref<32x32xf32, #tpu.memory_space<vmem>>, vector<32x32xf32>
    %cst_23 = arith.constant dense<0.000000e+00> : vector<32x128xf32>
    %45 = tpu.matmul %44, %43, %cst_23 {dimension_numbers = #tpu.dot_dimension_numbers<[1], [0], [0], [1], [0, 0, 1, 1], [], []>} : vector<32x32xf32>, vector<32x128xf32>, vector<32x128xf32> -> vector<32x128xf32>
    %c0_24 = arith.constant 0 : index
    %c0_25 = arith.constant 0 : index
    %46 = vector.load %arg10[%c0_24, %c0_25] : memref<32x1xf32, #tpu.memory_space<vmem>>, vector<32x1xf32>
    %47 = vector.broadcast %46 : vector<32x1xf32> to vector<32x128xf32>
    %48 = arith.addf %45, %47 : vector<32x128xf32>
    %cst_26 = arith.constant 0.707106769 : f32
    %49 = vector.broadcast %cst_26 : f32 to vector<32x128xf32>
    %50 = arith.mulf %49, %48 : vector<32x128xf32>
    %51 = math.erf %48 : vector<32x128xf32>
    %cst_27 = arith.constant 1.000000e+00 : f32
    %52 = vector.broadcast %cst_27 : f32 to vector<32x128xf32>
    %53 = arith.addf %52, %51 : vector<32x128xf32>
    %54 = arith.mulf %50, %53 : vector<32x128xf32>
    %55 = arith.addf %43, %54 : vector<32x128xf32>
    %c0_28 = arith.constant 0 : index
    %c0_29 = arith.constant 0 : index
    %56 = vector.load %arg11[%c0_28, %c0_29] : memref<32x32xf32, #tpu.memory_space<vmem>>, vector<32x32xf32>
    %cst_30 = arith.constant dense<0.000000e+00> : vector<32x128xf32>
    %57 = tpu.matmul %56, %55, %cst_30 {dimension_numbers = #tpu.dot_dimension_numbers<[1], [0], [0], [1], [0, 0, 1, 1], [], []>} : vector<32x32xf32>, vector<32x128xf32>, vector<32x128xf32> -> vector<32x128xf32>
    %c0_31 = arith.constant 0 : index
    %c0_32 = arith.constant 0 : index
    %58 = vector.load %arg12[%c0_31, %c0_32] : memref<32x1xf32, #tpu.memory_space<vmem>>, vector<32x1xf32>
    %59 = vector.broadcast %58 : vector<32x1xf32> to vector<32x128xf32>
    %60 = arith.addf %57, %59 : vector<32x128xf32>
    %cst_33 = arith.constant 0.707106769 : f32
    %61 = vector.broadcast %cst_33 : f32 to vector<32x128xf32>
    %62 = arith.mulf %61, %60 : vector<32x128xf32>
    %63 = math.erf %60 : vector<32x128xf32>
    %cst_34 = arith.constant 1.000000e+00 : f32
    %64 = vector.broadcast %cst_34 : f32 to vector<32x128xf32>
    %65 = arith.addf %64, %63 : vector<32x128xf32>
    %66 = arith.mulf %62, %65 : vector<32x128xf32>
    %67 = arith.addf %55, %66 : vector<32x128xf32>
    %c0_35 = arith.constant 0 : index
    %c0_36 = arith.constant 0 : index
    %68 = vector.load %arg13[%c0_35, %c0_36] : memref<2x32xf32, #tpu.memory_space<vmem>>, vector<2x32xf32>
    %cst_37 = arith.constant dense<0.000000e+00> : vector<2x128xf32>
    %69 = tpu.matmul %68, %67, %cst_37 {dimension_numbers = #tpu.dot_dimension_numbers<[1], [0], [0], [1], [0, 0, 1, 1], [], []>} : vector<2x32xf32>, vector<32x128xf32>, vector<2x128xf32> -> vector<2x128xf32>
    %c0_38 = arith.constant 0 : index
    %c0_39 = arith.constant 0 : index
    %70 = vector.load %arg14[%c0_38, %c0_39] : memref<2x1xf32, #tpu.memory_space<vmem>>, vector<2x1xf32>
    %71 = vector.broadcast %70 : vector<2x1xf32> to vector<2x128xf32>
    %72 = arith.addf %69, %71 : vector<2x128xf32>
    %c0_40 = arith.constant 0 : index
    %c0_41 = arith.constant 0 : index
    %73 = vector.load %arg15[%c0_40, %c0_41] : memref<2x128xf32, #tpu.memory_space<vmem>>, vector<2x128xf32>
    tpu.vector_store %arg15[%c0_40, %c0_41], %72 {strides = array<i32>} : memref<2x128xf32, #tpu.memory_space<vmem>>, vector<2x128xf32>,
    return
  }
  func.func @transform_0(%arg0: i32) -> (i32, i32) {
    %c0_i32 = arith.constant 0 : i32
    %c0_i32_0 = arith.constant 0 : i32
    return %c0_i32, %arg0 : i32, i32
  }
  func.func @transform_1(%arg0: i32) -> (i32, i32) {
    %c0_i32 = arith.constant 0 : i32
    %c0_i32_0 = arith.constant 0 : i32
    %c0_i32_1 = arith.constant 0 : i32
    return %c0_i32, %c0_i32_0 : i32, i32
  }
  func.func @transform_2(%arg0: i32) -> (i32, i32) {
    %c0_i32 = arith.constant 0 : i32
    %c0_i32_0 = arith.constant 0 : i32
    %c0_i32_1 = arith.constant 0 : i32
    return %c0_i32, %c0_i32_0 : i32, i32
  }
  func.func @transform_3(%arg0: i32) -> (i32, i32) {
    %c0_i32 = arith.constant 0 : i32
    %c0_i32_0 = arith.constant 0 : i32
    %c0_i32_1 = arith.constant 0 : i32
    return %c0_i32, %c0_i32_0 : i32, i32
  }
  func.func @transform_4(%arg0: i32) -> (i32, i32) {
    %c0_i32 = arith.constant 0 : i32
    %c0_i32_0 = arith.constant 0 : i32
    %c0_i32_1 = arith.constant 0 : i32
    return %c0_i32, %c0_i32_0 : i32, i32
  }
  func.func @transform_5(%arg0: i32) -> (i32, i32) {
    %c0_i32 = arith.constant 0 : i32
    %c0_i32_0 = arith.constant 0 : i32
    %c0_i32_1 = arith.constant 0 : i32
    return %c0_i32, %c0_i32_0 : i32, i32
  }
  func.func @transform_6(%arg0: i32) -> (i32, i32) {
    %c0_i32 = arith.constant 0 : i32
    %c0_i32_0 = arith.constant 0 : i32
    %c0_i32_1 = arith.constant 0 : i32
    return %c0_i32, %c0_i32_0 : i32, i32
  }
  func.func @transform_7(%arg0: i32) -> (i32, i32) {
    %c0_i32 = arith.constant 0 : i32
    %c0_i32_0 = arith.constant 0 : i32
    %c0_i32_1 = arith.constant 0 : i32
    return %c0_i32, %c0_i32_0 : i32, i32
  }
  func.func @transform_8(%arg0: i32) -> (i32, i32) {
    %c0_i32 = arith.constant 0 : i32
    %c0_i32_0 = arith.constant 0 : i32
    %c0_i32_1 = arith.constant 0 : i32
    return %c0_i32, %c0_i32_0 : i32, i32
  }
  func.func @transform_9(%arg0: i32) -> (i32, i32) {
    %c0_i32 = arith.constant 0 : i32
    %c0_i32_0 = arith.constant 0 : i32
    %c0_i32_1 = arith.constant 0 : i32
    return %c0_i32, %c0_i32_0 : i32, i32
  }
  func.func @transform_10(%arg0: i32) -> (i32, i32) {
    %c0_i32 = arith.constant 0 : i32
    %c0_i32_0 = arith.constant 0 : i32
    %c0_i32_1 = arith.constant 0 : i32
    return %c0_i32, %c0_i32_0 : i32, i32
  }
  func.func @transform_11(%arg0: i32) -> (i32, i32) {
    %c0_i32 = arith.constant 0 : i32
    %c0_i32_0 = arith.constant 0 : i32
    %c0_i32_1 = arith.constant 0 : i32
    return %c0_i32, %c0_i32_0 : i32, i32
  }
  func.func @transform_12(%arg0: i32) -> (i32, i32) {
    %c0_i32 = arith.constant 0 : i32
    %c0_i32_0 = arith.constant 0 : i32
    %c0_i32_1 = arith.constant 0 : i32
    return %c0_i32, %c0_i32_0 : i32, i32
  }
  func.func @transform_13(%arg0: i32) -> (i32, i32) {
    %c0_i32 = arith.constant 0 : i32
    %c0_i32_0 = arith.constant 0 : i32
    %c0_i32_1 = arith.constant 0 : i32
    return %c0_i32, %c0_i32_0 : i32, i32
  }
  func.func @transform_14(%arg0: i32) -> (i32, i32) {
    %c0_i32 = arith.constant 0 : i32
    %c0_i32_0 = arith.constant 0 : i32
    return %c0_i32, %arg0 : i32, i32
  }
}

</mosaic_0001>

<llo_original>
// kernel: tpu_custom_call.1
$region0: #{tpu_custom_call.1}
  #allocation0 [shape = 'u32[]', space=smem, size = 0x4, offset = 0x4, fixed_abs, tag = 'smem constant byte address 0x4 - core index']
  #allocation1 [shape = 'u32[144,128]{1,0:T(1,128)}', space=vmem, size = 0x12000, scoped, tag = 'internal scratch']
  %s0 = inlined_call_operand.vmem [shape: f32[3,128], index: 0, kind: input, shape index: {}]
  %s1 = inlined_call_operand.vmem [shape: f32[16,1], index: 1, kind: input, shape index: {}]
  %s2 = inlined_call_operand.vmem [shape: f32[16,1], index: 2, kind: input, shape index: {}]
  %s3 = inlined_call_operand.vmem [shape: f32[32,48], index: 3, kind: input, shape index: {}]
  %s4 = inlined_call_operand.vmem [shape: f32[32,48], index: 4, kind: input, shape index: {}]
  %s5 = inlined_call_operand.vmem [shape: f32[32,1], index: 5, kind: input, shape index: {}]
  %s6 = inlined_call_operand.vmem [shape: f32[32,32], index: 6, kind: input, shape index: {}]
  %s7 = inlined_call_operand.vmem [shape: f32[32,1], index: 7, kind: input, shape index: {}]
  %s8 = inlined_call_operand.vmem [shape: f32[32,32], index: 8, kind: input, shape index: {}]
  %s9 = inlined_call_operand.vmem [shape: f32[32,1], index: 9, kind: input, shape index: {}]
  %s10 = inlined_call_operand.vmem [shape: f32[32,32], index: 10, kind: input, shape index: {}]
  %s11 = inlined_call_operand.vmem [shape: f32[32,1], index: 11, kind: input, shape index: {}]
  %s12 = inlined_call_operand.vmem [shape: f32[2,32], index: 12, kind: input, shape index: {}]
  %s13 = inlined_call_operand.vmem [shape: f32[2,1], index: 13, kind: input, shape index: {}]
  %s14 = inlined_call_operand.hbm [shape: f32[2,128], index: 14, kind: output, shape index: {}]
  %s15 = sld [smem:[#allocation0]]
  $region66: #{tpu_custom_call.1} parent=0
    _
  %s17 = ssub.s32 1, %s15
  %s18 = scalar_select 0, %s17, %s15
  $region1: #{tpu_custom_call.1} parent=0
    #allocation2 [shape = 'u8[1024]{0}', space=vmem, size = 0x400, scoped, tag = 'output window, operand 0, single buffered']
    #allocation3 [shape = 's32[1]{0}', space=sflag, size = 0x4, scoped, tag = 'scoped memory for tpu_custom_call.1']
    %19 = vsyncpa [#allocation3], 0
    // Predicated region
    $region2: #{tpu_custom_call.1} parent=1 // pred_check
      _
    $region3: #{tpu_custom_call.1} parent=1 // pred_check_branch
      %21 = sbr.rel (0) target = $region5
    $region4: #{tpu_custom_call.1} parent=1 // pred_region
      _
    $region5: #{tpu_custom_call.1} parent=1 // pred_fallthru
      _
    // Predicated region
    $region6: #{tpu_custom_call.1} parent=1 // pred_check
      _
    $region7: #{tpu_custom_call.1} parent=1 // pred_check_branch
      %23 = sbr.rel (0) target = $region9
    $region8: #{tpu_custom_call.1} parent=1 // pred_region
      _
    $region9: #{tpu_custom_call.1} parent=1 // pred_fallthru
      _
    // Predicated region
    $region10: #{tpu_custom_call.1} parent=1 // pred_check
      _
    $region11: #{tpu_custom_call.1} parent=1 // pred_check_branch
      %25 = sbr.rel (0) target = $region13
    $region12: #{tpu_custom_call.1} parent=1 // pred_region
      _
    $region13: #{tpu_custom_call.1} parent=1 // pred_fallthru
      _
    // Predicated region
    $region14: #{tpu_custom_call.1} parent=1 // pred_check
      _
    $region15: #{tpu_custom_call.1} parent=1 // pred_check_branch
      %27 = sbr.rel (0) target = $region17
    $region16: #{tpu_custom_call.1} parent=1 // pred_region
      _
    $region17: #{tpu_custom_call.1} parent=1 // pred_fallthru
      _
    // Predicated region
    $region18: #{tpu_custom_call.1} parent=1 // pred_check
      _
    $region19: #{tpu_custom_call.1} parent=1 // pred_check_branch
      %29 = sbr.rel (0) target = $region21
    $region20: #{tpu_custom_call.1} parent=1 // pred_region
      _
    $region21: #{tpu_custom_call.1} parent=1 // pred_fallthru
      _
    // Predicated region
    $region22: #{tpu_custom_call.1} parent=1 // pred_check
      _
    $region23: #{tpu_custom_call.1} parent=1 // pred_check_branch
      %31 = sbr.rel (0) target = $region25
    $region24: #{tpu_custom_call.1} parent=1 // pred_region
      _
    $region25: #{tpu_custom_call.1} parent=1 // pred_fallthru
      _
    // Predicated region
    $region26: #{tpu_custom_call.1} parent=1 // pred_check
      _
    $region27: #{tpu_custom_call.1} parent=1 // pred_check_branch
      %33 = sbr.rel (0) target = $region29
    $region28: #{tpu_custom_call.1} parent=1 // pred_region
      _
    $region29: #{tpu_custom_call.1} parent=1 // pred_fallthru
      _
    // Predicated region
    $region30: #{tpu_custom_call.1} parent=1 // pred_check
      _
    $region31: #{tpu_custom_call.1} parent=1 // pred_check_branch
      %35 = sbr.rel (0) target = $region33
    $region32: #{tpu_custom_call.1} parent=1 // pred_region
      _
    $region33: #{tpu_custom_call.1} parent=1 // pred_fallthru
      _
    // Predicated region
    $region34: #{tpu_custom_call.1} parent=1 // pred_check
      _
    $region35: #{tpu_custom_call.1} parent=1 // pred_check_branch
      %37 = sbr.rel (0) target = $region37
    $region36: #{tpu_custom_call.1} parent=1 // pred_region
      _
    $region37: #{tpu_custom_call.1} parent=1 // pred_fallthru
      _
    // Predicated region
    $region38: #{tpu_custom_call.1} parent=1 // pred_check
      _
    $region39: #{tpu_custom_call.1} parent=1 // pred_check_branch
      %39 = sbr.rel (0) target = $region41
    $region40: #{tpu_custom_call.1} parent=1 // pred_region
      _
    $region41: #{tpu_custom_call.1} parent=1 // pred_fallthru
      _
    // Predicated region
    $region42: #{tpu_custom_call.1} parent=1 // pred_check
      _
    $region43: #{tpu_custom_call.1} parent=1 // pred_check_branch
      %41 = sbr.rel (0) target = $region45
    $region44: #{tpu_custom_call.1} parent=1 // pred_region
      _
    $region45: #{tpu_custom_call.1} parent=1 // pred_fallthru
      _
    // Predicated region
    $region46: #{tpu_custom_call.1} parent=1 // pred_check
      _
    $region47: #{tpu_custom_call.1} parent=1 // pred_check_branch
      %43 = sbr.rel (0) target = $region49
    $region48: #{tpu_custom_call.1} parent=1 // pred_region
      _
    $region49: #{tpu_custom_call.1} parent=1 // pred_fallthru
      _
    // Predicated region
    $region50: #{tpu_custom_call.1} parent=1 // pred_check
      _
    $region51: #{tpu_custom_call.1} parent=1 // pred_check_branch
      %45 = sbr.rel (0) target = $region53
    $region52: #{tpu_custom_call.1} parent=1 // pred_region
      _
    $region53: #{tpu_custom_call.1} parent=1 // pred_fallthru
      _
    // Predicated region
    $region54: #{tpu_custom_call.1} parent=1 // pred_check
      _
    $region55: #{tpu_custom_call.1} parent=1 // pred_check_branch
      %47 = sbr.rel (0) target = $region57
    $region56: #{tpu_custom_call.1} parent=1 // pred_region
      _
    $region57: #{tpu_custom_call.1} parent=1 // pred_fallthru
      _
    %v48 = vld [vmem:[%s0] sm:$0x7]
    %v49 = vld [vmem:[%s1] sm:$0xff]
    %v50 = vld [vmem:[%s1 + $0x8] sm:$0xff]
    %v51 = vld [vmem:[%s2] sm:$0xff]
    %v52 = vld [vmem:[%s2 + $0x8] sm:$0xff]
    %54 = vset.pattern.permute.xlu0 0
    %55 = vperm.xlu0 %54, %v49
    %v56 = vpop.permute.xlu0 %55
    %59 = vset.pattern.permute.xlu0 0
    %60 = vperm.xlu0 %59, %v50
    %v61 = vpop.permute.xlu0 %60
    %v63 = vlaneseq
    %v64 = vshrl.u32 %v63, 7
    %v65 = vsub.s32 0, %v64
    %v66 = vrot.slane %v48, %v65
    %v67 = vmul.f32 %v56, %v66
    %v68 = vmul.f32 %v61, %v66
    %v69 = vlaneseq
    %v70 = vshrl.u32 %v69, 7
    %v71 = vsub.s32 1, %v70
    %v72 = vrot.slane %v48, %v71
    %v73 = vmul.f32 %v56, %v72
    %v74 = vmul.f32 %v61, %v72
    %76 = vset.pattern.permute.xlu0 0
    %77 = vperm.xlu0 %76, %v51
    %v78 = vpop.permute.xlu0 %77
    %81 = vset.pattern.permute.xlu0 0
    %82 = vperm.xlu0 %81, %v52
    %v83 = vpop.permute.xlu0 %82
    %v85 = vlaneseq
    %v86 = vshrl.u32 %v85, 7
    %v87 = vsub.s32 2, %v86
    %v88 = vrot.slane %v48, %v87
    %v89 = vmul.f32 %v78, %v88
    %v90 = vmul.f32 %v83, %v88
    %v91 = vand.u32 2147483647, %v67
    %vm92 = vcmp.le.f32.partialorder %v91, 0.7853982
    %vm93 = vcmp.lt.s32.totalorder %v67, 0
    %v94 = vand.u32 %v67, 2139095040
    %v95 = vshrl.u32 %v94, 23
    %v96 = vsub.s32 %v95, 127
    %v97 = vand.u32 2147483647, %v67
    %v98 = vand.u32 %v97, 8388607
    %v99 = vor.u32 %v98, 8388608
    %v100 = vsub.s32 0, %v99
    %v101 = vadd.s32 %v96, 1
    %vm102 = vcmp.gt.s32.totalorder %v101, 0
    %v103 = vsel %vm102, %v101, 0
    %v104 = vshrl.u32 %v103, 5
    %v105 = vand.u32 %v103, 31
    %v106 = vsub.s32 32, %v105
    %v107 = vshrl.u32 683565275, %v106
    %v108 = vshll.u32 683565275, %v105
    %v109 = vshrl.u32 2475754826, %v106
    %v110 = vor.u32 %v108, %v109
    %v111 = vshll.u32 2475754826, %v105
    %v112 = vshrl.u32 2131351028, %v106
    %v113 = vor.u32 %v111, %v112
    %v114 = vshll.u32 2131351028, %v105
    %v115 = vshrl.u32 2102212464, %v106
    %v116 = vor.u32 %v114, %v115
    %v117 = vshll.u32 2102212464, %v105
    %v118 = vshrl.u32 920167782, %v106
    %v119 = vor.u32 %v117, %v118
    %v120 = vshll.u32 920167782, %v105
    %v121 = vshrl.u32 1326507024, %v106
    %v122 = vor.u32 %v120, %v121
    %vm123 = vcmp.lt.s32.totalorder %v104, 1
    %vm124 = vcmp.lt.s32.totalorder %v104, 2
    %vm125 = vcmp.lt.s32.totalorder %v104, 3
    %vm126 = vcmp.lt.s32.totalorder %v104, 4
    %v127 = vsel %vm123, %v107, %v110
    %v128 = vsel %vm126, %v116, 2102212464
    %v129 = vsel %vm125, %v113, %v128
    %v130 = vsel %vm124, %v127, %v129
    %v131 = vsel %vm123, %v110, %v113
    %v132 = vsel %vm126, %v119, 920167782
    %v133 = vsel %vm125, %v116, %v132
    %v134 = vsel %vm124, %v131, %v133
    %v135 = vsel %vm123, %v113, %v116
    %v136 = vsel %vm126, %v122, 1326507024
    %v137 = vsel %vm125, %v119, %v136
    %v138 = vsel %vm124, %v135, %v137
    %v139 = vshll.u32 %v99, 8
    %v140 = vmul.u32.u64.compose %v139, %v138
    %v141 = vextract.low.u32 %v140
    %v142 = vextract.high.u32 %v140
    %v143 = vmul.u32.u64.compose %v139, %v134
    %v144 = vextract.low.u32 %v143
    %v145 = vextract.high.u32 %v143
    %v146 = vmul.u32 %v139, %v130
    %v147 = vadd.s32 %v142, %v144
    %vm148 = vc.u32 %v142, %v144
    %v149 = vadd.s32 %v145, 1
    %v150 = vsel %vm148, %v149, %v145
    %v151 = vadd.s32 %v146, %v150
    %v152 = vadd.s32 %v151, 536870912
    %v153 = vshrl.u32 %v152, 30
    %v154 = vshll.u32 %v153, 30
    %v155 = vsub.s32 %v151, %v154
    %vm156 = vcmp.lt.s32.totalorder %v155, 0
    %v157 = vsub.s32 0, %v155
    %v158 = vsel %vm156, %v157, %v155
    %v159 = vclz %v158
    %v160 = vsub.s32 %v159, 2
    %vm161 = vcmp.gt.s32.totalorder 0, %v160
    %v162 = vsel %vm161, 0, %v160
    %v163 = vsub.s32 32, %v162
    %v164 = vshll.u32 %v155, %v162
    %v165 = vshrl.u32 %v147, %v163
    %v166 = vor.u32 %v164, %v165
    %v167 = vsub.s32 4294967266, %v162
    %v168 = vadd.s32 %v167, 127
    %v169 = vshll.u32 %v168, 23
    %v170 = vor.u32 4788187, %v169
    %v171 = vand.u32 2147483647, %v170
    %v173 = vcvt.s32.f32 %v166
    %v174 = vmul.f32 %v173, %v171
    %v175 = vxor.u32 %v174, 2147483648
    %v176 = vsel %vm93, %v175, %v174
    %v177 = vsub.s32 4, %v153
    %v178 = vsel %vm93, %v177, %v153
    %v179 = vsel %vm92, %v67, %v176
    %v180 = vsel %vm92, 0, %v178
    %v181 = vcosq.f32.pop %v179
    %v182 = vsinq.f32.pop %v179
    %vm183 = vweird.f32 %v67
    %v184 = vadd.s32 %v180, 3
    %v185 = vand.u32 %v184, 3
    %vm186 = vcmp.lt.s32.totalorder %v185, 2
    %vm187 = vcmp.eq.s32.totalorder %v185, 0
    %v188 = vxor.u32 %v182, 2147483648
    %v189 = vsel %vm187, %v181, %v188
    %vm190 = vcmp.eq.s32.totalorder %v185, 2
    %v191 = vxor.u32 %v181, 2147483648
    %v192 = vsel %vm190, %v191, %v182
    %v193 = vsel %vm186, %v189, %v192
    %v194 = vsel %vm183, nan, %v193
    %v195 = vand.u32 2147483647, %v68
    %vm196 = vcmp.le.f32.partialorder %v195, 0.7853982
    %vm197 = vcmp.lt.s32.totalorder %v68, 0
    %v198 = vand.u32 %v68, 2139095040
    %v199 = vshrl.u32 %v198, 23
    %v200 = vsub.s32 %v199, 127
    %v201 = vand.u32 2147483647, %v68
    %v202 = vand.u32 %v201, 8388607
    %v203 = vor.u32 %v202, 8388608
    %v204 = vsub.s32 0, %v203
    %v205 = vadd.s32 %v200, 1
    %vm206 = vcmp.gt.s32.totalorder %v205, 0
    %v207 = vsel %vm206, %v205, 0
    %v208 = vshrl.u32 %v207, 5
    %v209 = vand.u32 %v207, 31
    %v210 = vsub.s32 32, %v209
    %v211 = vshrl.u32 683565275, %v210
    %v212 = vshll.u32 683565275, %v209
    %v213 = vshrl.u32 2475754826, %v210
    %v214 = vor.u32 %v212, %v213
    %v215 = vshll.u32 2475754826, %v209
    %v216 = vshrl.u32 2131351028, %v210
    %v217 = vor.u32 %v215, %v216
    %v218 = vshll.u32 2131351028, %v209
    %v219 = vshrl.u32 2102212464, %v210
    %v220 = vor.u32 %v218, %v219
    %v221 = vshll.u32 2102212464, %v209
    %v222 = vshrl.u32 920167782, %v210
    %v223 = vor.u32 %v221, %v222
    %v224 = vshll.u32 920167782, %v209
    %v225 = vshrl.u32 1326507024, %v210
    %v226 = vor.u32 %v224, %v225
    %vm227 = vcmp.lt.s32.totalorder %v208, 1
    %vm228 = vcmp.lt.s32.totalorder %v208, 2
    %vm229 = vcmp.lt.s32.totalorder %v208, 3
    %vm230 = vcmp.lt.s32.totalorder %v208, 4
    %v231 = vsel %vm227, %v211, %v214
    %v232 = vsel %vm230, %v220, 2102212464
    %v233 = vsel %vm229, %v217, %v232
    %v234 = vsel %vm228, %v231, %v233
    %v235 = vsel %vm227, %v214, %v217
    %v236 = vsel %vm230, %v223, 920167782
    %v237 = vsel %vm229, %v220, %v236
    %v238 = vsel %vm228, %v235, %v237
    %v239 = vsel %vm227, %v217, %v220
    %v240 = vsel %vm230, %v226, 1326507024
    %v241 = vsel %vm229, %v223, %v240
    %v242 = vsel %vm228, %v239, %v241
    %v243 = vshll.u32 %v203, 8
    %v244 = vmul.u32.u64.compose %v243, %v242
    %v245 = vextract.low.u32 %v244
    %v246 = vextract.high.u32 %v244
    %v247 = vmul.u32.u64.compose %v243, %v238
    %v248 = vextract.low.u32 %v247
    %v249 = vextract.high.u32 %v247
    %v250 = vmul.u32 %v243, %v234
    %v251 = vadd.s32 %v246, %v248
    %vm252 = vc.u32 %v246, %v248
    %v253 = vadd.s32 %v249, 1
    %v254 = vsel %vm252, %v253, %v249
    %v255 = vadd.s32 %v250, %v254
    %v256 = vadd.s32 %v255, 536870912
    %v257 = vshrl.u32 %v256, 30
    %v258 = vshll.u32 %v257, 30
    %v259 = vsub.s32 %v255, %v258
    %vm260 = vcmp.lt.s32.totalorder %v259, 0
    %v261 = vsub.s32 0, %v259
    %v262 = vsel %vm260, %v261, %v259
    %v263 = vclz %v262
    %v264 = vsub.s32 %v263, 2
    %vm265 = vcmp.gt.s32.totalorder 0, %v264
    %v266 = vsel %vm265, 0, %v264
    %v267 = vsub.s32 32, %v266
    %v268 = vshll.u32 %v259, %v266
    %v269 = vshrl.u32 %v251, %v267
    %v270 = vor.u32 %v268, %v269
    %v271 = vsub.s32 4294967266, %v266
    %v272 = vadd.s32 %v271, 127
    %v273 = vshll.u32 %v272, 23
    %v274 = vor.u32 4788187, %v273
    %v275 = vand.u32 2147483647, %v274
    %v277 = vcvt.s32.f32 %v270
    %v278 = vmul.f32 %v277, %v275
    %v279 = vxor.u32 %v278, 2147483648
    %v280 = vsel %vm197, %v279, %v278
    %v281 = vsub.s32 4, %v257
    %v282 = vsel %vm197, %v281, %v257
    %v283 = vsel %vm196, %v68, %v280
    %v284 = vsel %vm196, 0, %v282
    %v285 = vcosq.f32.pop %v283
    %v286 = vsinq.f32.pop %v283
    %vm287 = vweird.f32 %v68
    %v288 = vadd.s32 %v284, 3
    %v289 = vand.u32 %v288, 3
    %vm290 = vcmp.lt.s32.totalorder %v289, 2
    %vm291 = vcmp.eq.s32.totalorder %v289, 0
    %v292 = vxor.u32 %v286, 2147483648
    %v293 = vsel %vm291, %v285, %v292
    %vm294 = vcmp.eq.s32.totalorder %v289, 2
    %v295 = vxor.u32 %v285, 2147483648
    %v296 = vsel %vm294, %v295, %v286
    %v297 = vsel %vm290, %v293, %v296
    %v298 = vsel %vm287, nan, %v297
    %v299 = vand.u32 2147483647, %v73
    %vm300 = vcmp.le.f32.partialorder %v299, 0.7853982
    %vm301 = vcmp.lt.s32.totalorder %v73, 0
    %v302 = vand.u32 %v73, 2139095040
    %v303 = vshrl.u32 %v302, 23
    %v304 = vsub.s32 %v303, 127
    %v305 = vand.u32 2147483647, %v73
    %v306 = vand.u32 %v305, 8388607
    %v307 = vor.u32 %v306, 8388608
    %v308 = vsub.s32 0, %v307
    %v309 = vadd.s32 %v304, 1
    %vm310 = vcmp.gt.s32.totalorder %v309, 0
    %v311 = vsel %vm310, %v309, 0
    %v312 = vshrl.u32 %v311, 5
    %v313 = vand.u32 %v311, 31
    %v314 = vsub.s32 32, %v313
    %v315 = vshrl.u32 683565275, %v314
    %v316 = vshll.u32 683565275, %v313
    %v317 = vshrl.u32 2475754826, %v314
    %v318 = vor.u32 %v316, %v317
    %v319 = vshll.u32 2475754826, %v313
    %v320 = vshrl.u32 2131351028, %v314
    %v321 = vor.u32 %v319, %v320
    %v322 = vshll.u32 2131351028, %v313
    %v323 = vshrl.u32 2102212464, %v314
    %v324 = vor.u32 %v322, %v323
    %v325 = vshll.u32 2102212464, %v313
    %v326 = vshrl.u32 920167782, %v314
    %v327 = vor.u32 %v325, %v326
    %v328 = vshll.u32 920167782, %v313
    %v329 = vshrl.u32 1326507024, %v314
    %v330 = vor.u32 %v328, %v329
    %vm331 = vcmp.lt.s32.totalorder %v312, 1
    %vm332 = vcmp.lt.s32.totalorder %v312, 2
    %vm333 = vcmp.lt.s32.totalorder %v312, 3
    %vm334 = vcmp.lt.s32.totalorder %v312, 4
    %v335 = vsel %vm331, %v315, %v318
    %v336 = vsel %vm334, %v324, 2102212464
    %v337 = vsel %vm333, %v321, %v336
    %v338 = vsel %vm332, %v335, %v337
    %v339 = vsel %vm331, %v318, %v321
    %v340 = vsel %vm334, %v327, 920167782
    %v341 = vsel %vm333, %v324, %v340
    %v342 = vsel %vm332, %v339, %v341
    %v343 = vsel %vm331, %v321, %v324
    %v344 = vsel %vm334, %v330, 1326507024
    %v345 = vsel %vm333, %v327, %v344
    %v346 = vsel %vm332, %v343, %v345
    %v347 = vshll.u32 %v307, 8
    %v348 = vmul.u32.u64.compose %v347, %v346
    %v349 = vextract.low.u32 %v348
    %v350 = vextract.high.u32 %v348
    %v351 = vmul.u32.u64.compose %v347, %v342
    %v352 = vextract.low.u32 %v351
    %v353 = vextract.high.u32 %v351
    %v354 = vmul.u32 %v347, %v338
    %v355 = vadd.s32 %v350, %v352
    %vm356 = vc.u32 %v350, %v352
    %v357 = vadd.s32 %v353, 1
    %v358 = vsel %vm356, %v357, %v353
    %v359 = vadd.s32 %v354, %v358
    %v360 = vadd.s32 %v359, 536870912
    %v361 = vshrl.u32 %v360, 30
    %v362 = vshll.u32 %v361, 30
    %v363 = vsub.s32 %v359, %v362
    %vm364 = vcmp.lt.s32.totalorder %v363, 0
    %v365 = vsub.s32 0, %v363
    %v366 = vsel %vm364, %v365, %v363
    %v367 = vclz %v366
    %v368 = vsub.s32 %v367, 2
    %vm369 = vcmp.gt.s32.totalorder 0, %v368
    %v370 = vsel %vm369, 0, %v368
    %v371 = vsub.s32 32, %v370
    %v372 = vshll.u32 %v363, %v370
    %v373 = vshrl.u32 %v355, %v371
    %v374 = vor.u32 %v372, %v373
    %v375 = vsub.s32 4294967266, %v370
    %v376 = vadd.s32 %v375, 127
    %v377 = vshll.u32 %v376, 23
    %v378 = vor.u32 4788187, %v377
    %v379 = vand.u32 2147483647, %v378
    %v381 = vcvt.s32.f32 %v374
    %v382 = vmul.f32 %v381, %v379
    %v383 = vxor.u32 %v382, 2147483648
    %v384 = vsel %vm301, %v383, %v382
    %v385 = vsub.s32 4, %v361
    %v386 = vsel %vm301, %v385, %v361
    %v387 = vsel %vm300, %v73, %v384
    %v388 = vsel %vm300, 0, %v386
    %v389 = vcosq.f32.pop %v387
    %v390 = vsinq.f32.pop %v387
    %vm391 = vweird.f32 %v73
    %v392 = vadd.s32 %v388, 3
    %v393 = vand.u32 %v392, 3
    %vm394 = vcmp.lt.s32.totalorder %v393, 2
    %vm395 = vcmp.eq.s32.totalorder %v393, 0
    %v396 = vxor.u32 %v390, 2147483648
    %v397 = vsel %vm395, %v389, %v396
    %vm398 = vcmp.eq.s32.totalorder %v393, 2
    %v399 = vxor.u32 %v389, 2147483648
    %v400 = vsel %vm398, %v399, %v390
    %v401 = vsel %vm394, %v397, %v400
    %v402 = vsel %vm391, nan, %v401
    %v403 = vand.u32 2147483647, %v74
    %vm404 = vcmp.le.f32.partialorder %v403, 0.7853982
    %vm405 = vcmp.lt.s32.totalorder %v74, 0
    %v406 = vand.u32 %v74, 2139095040
    %v407 = vshrl.u32 %v406, 23
    %v408 = vsub.s32 %v407, 127
    %v409 = vand.u32 2147483647, %v74
    %v410 = vand.u32 %v409, 8388607
    %v411 = vor.u32 %v410, 8388608
    %v412 = vsub.s32 0, %v411
    %v413 = vadd.s32 %v408, 1
    %vm414 = vcmp.gt.s32.totalorder %v413, 0
    %v415 = vsel %vm414, %v413, 0
    %v416 = vshrl.u32 %v415, 5
    %v417 = vand.u32 %v415, 31
    %v418 = vsub.s32 32, %v417
    %v419 = vshrl.u32 683565275, %v418
    %v420 = vshll.u32 683565275, %v417
    %v421 = vshrl.u32 2475754826, %v418
    %v422 = vor.u32 %v420, %v421
    %v423 = vshll.u32 2475754826, %v417
    %v424 = vshrl.u32 2131351028, %v418
    %v425 = vor.u32 %v423, %v424
    %v426 = vshll.u32 2131351028, %v417
    %v427 = vshrl.u32 2102212464, %v418
    %v428 = vor.u32 %v426, %v427
    %v429 = vshll.u32 2102212464, %v417
    %v430 = vshrl.u32 920167782, %v418
    %v431 = vor.u32 %v429, %v430
    %v432 = vshll.u32 920167782, %v417
    %v433 = vshrl.u32 1326507024, %v418
    %v434 = vor.u32 %v432, %v433
    %vm435 = vcmp.lt.s32.totalorder %v416, 1
    %vm436 = vcmp.lt.s32.totalorder %v416, 2
    %vm437 = vcmp.lt.s32.totalorder %v416, 3
    %vm438 = vcmp.lt.s32.totalorder %v416, 4
    %v439 = vsel %vm435, %v419, %v422
    %v440 = vsel %vm438, %v428, 2102212464
    %v441 = vsel %vm437, %v425, %v440
    %v442 = vsel %vm436, %v439, %v441
    %v443 = vsel %vm435, %v422, %v425
    %v444 = vsel %vm438, %v431, 920167782
    %v445 = vsel %vm437, %v428, %v444
    %v446 = vsel %vm436, %v443, %v445
    %v447 = vsel %vm435, %v425, %v428
    %v448 = vsel %vm438, %v434, 1326507024
    %v449 = vsel %vm437, %v431, %v448
    %v450 = vsel %vm436, %v447, %v449
    %v451 = vshll.u32 %v411, 8
    %v452 = vmul.u32.u64.compose %v451, %v450
    %v453 = vextract.low.u32 %v452
    %v454 = vextract.high.u32 %v452
    %v455 = vmul.u32.u64.compose %v451, %v446
    %v456 = vextract.low.u32 %v455
    %v457 = vextract.high.u32 %v455
    %v458 = vmul.u32 %v451, %v442
    %v459 = vadd.s32 %v454, %v456
    %vm460 = vc.u32 %v454, %v456
    %v461 = vadd.s32 %v457, 1
    %v462 = vsel %vm460, %v461, %v457
    %v463 = vadd.s32 %v458, %v462
    %v464 = vadd.s32 %v463, 536870912
    %v465 = vshrl.u32 %v464, 30
    %v466 = vshll.u32 %v465, 30
    %v467 = vsub.s32 %v463, %v466
    %vm468 = vcmp.lt.s32.totalorder %v467, 0
    %v469 = vsub.s32 0, %v467
    %v470 = vsel %vm468, %v469, %v467
    %v471 = vclz %v470
    %v472 = vsub.s32 %v471, 2
    %vm473 = vcmp.gt.s32.totalorder 0, %v472
    %v474 = vsel %vm473, 0, %v472
    %v475 = vsub.s32 32, %v474
    %v476 = vshll.u32 %v467, %v474
    %v477 = vshrl.u32 %v459, %v475
    %v478 = vor.u32 %v476, %v477
    %v479 = vsub.s32 4294967266, %v474
    %v480 = vadd.s32 %v479, 127
    %v481 = vshll.u32 %v480, 23
    %v482 = vor.u32 4788187, %v481
    %v483 = vand.u32 2147483647, %v482
    %v485 = vcvt.s32.f32 %v478
    %v486 = vmul.f32 %v485, %v483
    %v487 = vxor.u32 %v486, 2147483648
    %v488 = vsel %vm405, %v487, %v486
    %v489 = vsub.s32 4, %v465
    %v490 = vsel %vm405, %v489, %v465
    %v491 = vsel %vm404, %v74, %v488
    %v492 = vsel %vm404, 0, %v490
    %v493 = vcosq.f32.pop %v491
    %v494 = vsinq.f32.pop %v491
    %vm495 = vweird.f32 %v74
    %v496 = vadd.s32 %v492, 3
    %v497 = vand.u32 %v496, 3
    %vm498 = vcmp.lt.s32.totalorder %v497, 2
    %vm499 = vcmp.eq.s32.totalorder %v497, 0
    %v500 = vxor.u32 %v494, 2147483648
    %v501 = vsel %vm499, %v493, %v500
    %vm502 = vcmp.eq.s32.totalorder %v497, 2
    %v503 = vxor.u32 %v493, 2147483648
    %v504 = vsel %vm502, %v503, %v494
    %v505 = vsel %vm498, %v501, %v504
    %v506 = vsel %vm495, nan, %v505
    %v507 = vand.u32 2147483647, %v89
    %vm508 = vcmp.le.f32.partialorder %v507, 0.7853982
    %vm509 = vcmp.lt.s32.totalorder %v89, 0
    %v510 = vand.u32 %v89, 2139095040
    %v511 = vshrl.u32 %v510, 23
    %v512 = vsub.s32 %v511, 127
    %v513 = vand.u32 2147483647, %v89
    %v514 = vand.u32 %v513, 8388607
    %v515 = vor.u32 %v514, 8388608
    %v516 = vsub.s32 0, %v515
    %v517 = vadd.s32 %v512, 1
    %vm518 = vcmp.gt.s32.totalorder %v517, 0
    %v519 = vsel %vm518, %v517, 0
    %v520 = vshrl.u32 %v519, 5
    %v521 = vand.u32 %v519, 31
    %v522 = vsub.s32 32, %v521
    %v523 = vshrl.u32 683565275, %v522
    %v524 = vshll.u32 683565275, %v521
    %v525 = vshrl.u32 2475754826, %v522
    %v526 = vor.u32 %v524, %v525
    %v527 = vshll.u32 2475754826, %v521
    %v528 = vshrl.u32 2131351028, %v522
    %v529 = vor.u32 %v527, %v528
    %v530 = vshll.u32 2131351028, %v521
    %v531 = vshrl.u32 2102212464, %v522
    %v532 = vor.u32 %v530, %v531
    %v533 = vshll.u32 2102212464, %v521
    %v534 = vshrl.u32 920167782, %v522
    %v535 = vor.u32 %v533, %v534
    %v536 = vshll.u32 920167782, %v521
    %v537 = vshrl.u32 1326507024, %v522
    %v538 = vor.u32 %v536, %v537
    %vm539 = vcmp.lt.s32.totalorder %v520, 1
    %vm540 = vcmp.lt.s32.totalorder %v520, 2
    %vm541 = vcmp.lt.s32.totalorder %v520, 3
    %vm542 = vcmp.lt.s32.totalorder %v520, 4
    %v543 = vsel %vm539, %v523, %v526
    %v544 = vsel %vm542, %v532, 2102212464
    %v545 = vsel %vm541, %v529, %v544
    %v546 = vsel %vm540, %v543, %v545
    %v547 = vsel %vm539, %v526, %v529
    %v548 = vsel %vm542, %v535, 920167782
    %v549 = vsel %vm541, %v532, %v548
    %v550 = vsel %vm540, %v547, %v549
    %v551 = vsel %vm539, %v529, %v532
    %v552 = vsel %vm542, %v538, 1326507024
    %v553 = vsel %vm541, %v535, %v552
    %v554 = vsel %vm540, %v551, %v553
    %v555 = vshll.u32 %v515, 8
    %v556 = vmul.u32.u64.compose %v555, %v554
    %v557 = vextract.low.u32 %v556
    %v558 = vextract.high.u32 %v556
    %v559 = vmul.u32.u64.compose %v555, %v550
    %v560 = vextract.low.u32 %v559
    %v561 = vextract.high.u32 %v559
    %v562 = vmul.u32 %v555, %v546
    %v563 = vadd.s32 %v558, %v560
    %vm564 = vc.u32 %v558, %v560
    %v565 = vadd.s32 %v561, 1
    %v566 = vsel %vm564, %v565, %v561
    %v567 = vadd.s32 %v562, %v566
    %v568 = vadd.s32 %v567, 536870912
    %v569 = vshrl.u32 %v568, 30
    %v570 = vshll.u32 %v569, 30
    %v571 = vsub.s32 %v567, %v570
    %vm572 = vcmp.lt.s32.totalorder %v571, 0
    %v573 = vsub.s32 0, %v571
    %v574 = vsel %vm572, %v573, %v571
    %v575 = vclz %v574
    %v576 = vsub.s32 %v575, 2
    %vm577 = vcmp.gt.s32.totalorder 0, %v576
    %v578 = vsel %vm577, 0, %v576
    %v579 = vsub.s32 32, %v578
    %v580 = vshll.u32 %v571, %v578
    %v581 = vshrl.u32 %v563, %v579
    %v582 = vor.u32 %v580, %v581
    %v583 = vsub.s32 4294967266, %v578
    %v584 = vadd.s32 %v583, 127
    %v585 = vshll.u32 %v584, 23
    %v586 = vor.u32 4788187, %v585
    %v587 = vand.u32 2147483647, %v586
    %v589 = vcvt.s32.f32 %v582
    %v590 = vmul.f32 %v589, %v587
    %v591 = vxor.u32 %v590, 2147483648
    %v592 = vsel %vm509, %v591, %v590
    %v593 = vsub.s32 4, %v569
    %v594 = vsel %vm509, %v593, %v569
    %v595 = vsel %vm508, %v89, %v592
    %v596 = vsel %vm508, 0, %v594
    %v597 = vcosq.f32.pop %v595
    %v598 = vsinq.f32.pop %v595
    %vm599 = vweird.f32 %v89
    %v600 = vadd.s32 %v596, 3
    %v601 = vand.u32 %v600, 3
    %vm602 = vcmp.lt.s32.totalorder %v601, 2
    %vm603 = vcmp.eq.s32.totalorder %v601, 0
    %v604 = vxor.u32 %v598, 2147483648
    %v605 = vsel %vm603, %v597, %v604
    %vm606 = vcmp.eq.s32.totalorder %v601, 2
    %v607 = vxor.u32 %v597, 2147483648
    %v608 = vsel %vm606, %v607, %v598
    %v609 = vsel %vm602, %v605, %v608
    %v610 = vsel %vm599, nan, %v609
    %v611 = vand.u32 2147483647, %v90
    %vm612 = vcmp.le.f32.partialorder %v611, 0.7853982
    %vm613 = vcmp.lt.s32.totalorder %v90, 0
    %v614 = vand.u32 %v90, 2139095040
    %v615 = vshrl.u32 %v614, 23
    %v616 = vsub.s32 %v615, 127
    %v617 = vand.u32 2147483647, %v90
    %v618 = vand.u32 %v617, 8388607
    %v619 = vor.u32 %v618, 8388608
    %v620 = vsub.s32 0, %v619
    %v621 = vadd.s32 %v616, 1
    %vm622 = vcmp.gt.s32.totalorder %v621, 0
    %v623 = vsel %vm622, %v621, 0
    %v624 = vshrl.u32 %v623, 5
    %v625 = vand.u32 %v623, 31
    %v626 = vsub.s32 32, %v625
    %v627 = vshrl.u32 683565275, %v626
    %v628 = vshll.u32 683565275, %v625
    %v629 = vshrl.u32 2475754826, %v626
    %v630 = vor.u32 %v628, %v629
    %v631 = vshll.u32 2475754826, %v625
    %v632 = vshrl.u32 2131351028, %v626
    %v633 = vor.u32 %v631, %v632
    %v634 = vshll.u32 2131351028, %v625
    %v635 = vshrl.u32 2102212464, %v626
    %v636 = vor.u32 %v634, %v635
    %v637 = vshll.u32 2102212464, %v625
    %v638 = vshrl.u32 920167782, %v626
    %v639 = vor.u32 %v637, %v638
    %v640 = vshll.u32 920167782, %v625
    %v641 = vshrl.u32 1326507024, %v626
    %v642 = vor.u32 %v640, %v641
    %vm643 = vcmp.lt.s32.totalorder %v624, 1
    %vm644 = vcmp.lt.s32.totalorder %v624, 2
    %vm645 = vcmp.lt.s32.totalorder %v624, 3
    %vm646 = vcmp.lt.s32.totalorder %v624, 4
    %v647 = vsel %vm643, %v627, %v630
    %v648 = vsel %vm646, %v636, 2102212464
    %v649 = vsel %vm645, %v633, %v648
    %v650 = vsel %vm644, %v647, %v649
    %v651 = vsel %vm643, %v630, %v633
    %v652 = vsel %vm646, %v639, 920167782
    %v653 = vsel %vm645, %v636, %v652
    %v654 = vsel %vm644, %v651, %v653
    %v655 = vsel %vm643, %v633, %v636
    %v656 = vsel %vm646, %v642, 1326507024
    %v657 = vsel %vm645, %v639, %v656
    %v658 = vsel %vm644, %v655, %v657
    %v659 = vshll.u32 %v619, 8
    %v660 = vmul.u32.u64.compose %v659, %v658
    %v661 = vextract.low.u32 %v660
    %v662 = vextract.high.u32 %v660
    %v663 = vmul.u32.u64.compose %v659, %v654
    %v664 = vextract.low.u32 %v663
    %v665 = vextract.high.u32 %v663
    %v666 = vmul.u32 %v659, %v650
    %v667 = vadd.s32 %v662, %v664
    %vm668 = vc.u32 %v662, %v664
    %v669 = vadd.s32 %v665, 1
    %v670 = vsel %vm668, %v669, %v665
    %v671 = vadd.s32 %v666, %v670
    %v672 = vadd.s32 %v671, 536870912
    %v673 = vshrl.u32 %v672, 30
    %v674 = vshll.u32 %v673, 30
    %v675 = vsub.s32 %v671, %v674
    %vm676 = vcmp.lt.s32.totalorder %v675, 0
    %v677 = vsub.s32 0, %v675
    %v678 = vsel %vm676, %v677, %v675
    %v679 = vclz %v678
    %v680 = vsub.s32 %v679, 2
    %vm681 = vcmp.gt.s32.totalorder 0, %v680
    %v682 = vsel %vm681, 0, %v680
    %v683 = vsub.s32 32, %v682
    %v684 = vshll.u32 %v675, %v682
    %v685 = vshrl.u32 %v667, %v683
    %v686 = vor.u32 %v684, %v685
    %v687 = vsub.s32 4294967266, %v682
    %v688 = vadd.s32 %v687, 127
    %v689 = vshll.u32 %v688, 23
    %v690 = vor.u32 4788187, %v689
    %v691 = vand.u32 2147483647, %v690
    %v693 = vcvt.s32.f32 %v686
    %v694 = vmul.f32 %v693, %v691
    %v695 = vxor.u32 %v694, 2147483648
    %v696 = vsel %vm613, %v695, %v694
    %v697 = vsub.s32 4, %v673
    %v698 = vsel %vm613, %v697, %v673
    %v699 = vsel %vm612, %v90, %v696
    %v700 = vsel %vm612, 0, %v698
    %v701 = vcosq.f32.pop %v699
    %v702 = vsinq.f32.pop %v699
    %vm703 = vweird.f32 %v90
    %v704 = vadd.s32 %v700, 3
    %v705 = vand.u32 %v704, 3
    %vm706 = vcmp.lt.s32.totalorder %v705, 2
    %vm707 = vcmp.eq.s32.totalorder %v705, 0
    %v708 = vxor.u32 %v702, 2147483648
    %v709 = vsel %vm707, %v701, %v708
    %vm710 = vcmp.eq.s32.totalorder %v705, 2
    %v711 = vxor.u32 %v701, 2147483648
    %v712 = vsel %vm710, %v711, %v702
    %v713 = vsel %vm706, %v709, %v712
    %v714 = vsel %vm703, nan, %v713
    %v715 = vand.u32 2147483647, %v67
    %vm716 = vcmp.le.f32.partialorder %v715, 0.7853982
    %vm717 = vcmp.lt.s32.totalorder %v67, 0
    %v718 = vand.u32 %v67, 2139095040
    %v719 = vshrl.u32 %v718, 23
    %v720 = vsub.s32 %v719, 127
    %v721 = vand.u32 2147483647, %v67
    %v722 = vand.u32 %v721, 8388607
    %v723 = vor.u32 %v722, 8388608
    %v724 = vsub.s32 0, %v723
    %v725 = vadd.s32 %v720, 1
    %vm726 = vcmp.gt.s32.totalorder %v725, 0
    %v727 = vsel %vm726, %v725, 0
    %v728 = vshrl.u32 %v727, 5
    %v729 = vand.u32 %v727, 31
    %v730 = vsub.s32 32, %v729
    %v731 = vshrl.u32 683565275, %v730
    %v732 = vshll.u32 683565275, %v729
    %v733 = vshrl.u32 2475754826, %v730
    %v734 = vor.u32 %v732, %v733
    %v735 = vshll.u32 2475754826, %v729
    %v736 = vshrl.u32 2131351028, %v730
    %v737 = vor.u32 %v735, %v736
    %v738 = vshll.u32 2131351028, %v729
    %v739 = vshrl.u32 2102212464, %v730
    %v740 = vor.u32 %v738, %v739
    %v741 = vshll.u32 2102212464, %v729
    %v742 = vshrl.u32 920167782, %v730
    %v743 = vor.u32 %v741, %v742
    %v744 = vshll.u32 920167782, %v729
    %v745 = vshrl.u32 1326507024, %v730
    %v746 = vor.u32 %v744, %v745
    %vm747 = vcmp.lt.s32.totalorder %v728, 1
    %vm748 = vcmp.lt.s32.totalorder %v728, 2
    %vm749 = vcmp.lt.s32.totalorder %v728, 3
    %vm750 = vcmp.lt.s32.totalorder %v728, 4
    %v751 = vsel %vm747, %v731, %v734
    %v752 = vsel %vm750, %v740, 2102212464
    %v753 = vsel %vm749, %v737, %v752
    %v754 = vsel %vm748, %v751, %v753
    %v755 = vsel %vm747, %v734, %v737
    %v756 = vsel %vm750, %v743, 920167782
    %v757 = vsel %vm749, %v740, %v756
    %v758 = vsel %vm748, %v755, %v757
    %v759 = vsel %vm747, %v737, %v740
    %v760 = vsel %vm750, %v746, 1326507024
    %v761 = vsel %vm749, %v743, %v760
    %v762 = vsel %vm748, %v759, %v761
    %v763 = vshll.u32 %v723, 8
    %v764 = vmul.u32.u64.compose %v763, %v762
    %v765 = vextract.low.u32 %v764
    %v766 = vextract.high.u32 %v764
    %v767 = vmul.u32.u64.compose %v763, %v758
    %v768 = vextract.low.u32 %v767
    %v769 = vextract.high.u32 %v767
    %v770 = vmul.u32 %v763, %v754
    %v771 = vadd.s32 %v766, %v768
    %vm772 = vc.u32 %v766, %v768
    %v773 = vadd.s32 %v769, 1
    %v774 = vsel %vm772, %v773, %v769
    %v775 = vadd.s32 %v770, %v774
    %v776 = vadd.s32 %v775, 536870912
    %v777 = vshrl.u32 %v776, 30
    %v778 = vshll.u32 %v777, 30
    %v779 = vsub.s32 %v775, %v778
    %vm780 = vcmp.lt.s32.totalorder %v779, 0
    %v781 = vsub.s32 0, %v779
    %v782 = vsel %vm780, %v781, %v779
    %v783 = vclz %v782
    %v784 = vsub.s32 %v783, 2
    %vm785 = vcmp.gt.s32.totalorder 0, %v784
    %v786 = vsel %vm785, 0, %v784
    %v787 = vsub.s32 32, %v786
    %v788 = vshll.u32 %v779, %v786
    %v789 = vshrl.u32 %v771, %v787
    %v790 = vor.u32 %v788, %v789
    %v791 = vsub.s32 4294967266, %v786
    %v792 = vadd.s32 %v791, 127
    %v793 = vshll.u32 %v792, 23
    %v794 = vor.u32 4788187, %v793
    %v795 = vand.u32 2147483647, %v794
    %v797 = vcvt.s32.f32 %v790
    %v798 = vmul.f32 %v797, %v795
    %v799 = vxor.u32 %v798, 2147483648
    %v800 = vsel %vm717, %v799, %v798
    %v801 = vsub.s32 4, %v777
    %v802 = vsel %vm717, %v801, %v777
    %v803 = vsel %vm716, %v67, %v800
    %v804 = vsel %vm716, 0, %v802
    %v805 = vcosq.f32.pop %v803
    %v806 = vsinq.f32.pop %v803
    %vm807 = vweird.f32 %v67
    %v808 = vand.u32 %v804, 3
    %vm809 = vcmp.lt.s32.totalorder %v808, 2
    %vm810 = vcmp.eq.s32.totalorder %v808, 0
    %v811 = vxor.u32 %v806, 2147483648
    %v812 = vsel %vm810, %v805, %v811
    %vm813 = vcmp.eq.s32.totalorder %v808, 2
    %v814 = vxor.u32 %v805, 2147483648
    %v815 = vsel %vm813, %v814, %v806
    %v816 = vsel %vm809, %v812, %v815
    %v817 = vsel %vm807, nan, %v816
    %v818 = vand.u32 2147483647, %v68
    %vm819 = vcmp.le.f32.partialorder %v818, 0.7853982
    %vm820 = vcmp.lt.s32.totalorder %v68, 0
    %v821 = vand.u32 %v68, 2139095040
    %v822 = vshrl.u32 %v821, 23
    %v823 = vsub.s32 %v822, 127
    %v824 = vand.u32 2147483647, %v68
    %v825 = vand.u32 %v824, 8388607
    %v826 = vor.u32 %v825, 8388608
    %v827 = vsub.s32 0, %v826
    %v828 = vadd.s32 %v823, 1
    %vm829 = vcmp.gt.s32.totalorder %v828, 0
    %v830 = vsel %vm829, %v828, 0
    %v831 = vshrl.u32 %v830, 5
    %v832 = vand.u32 %v830, 31
    %v833 = vsub.s32 32, %v832
    %v834 = vshrl.u32 683565275, %v833
    %v835 = vshll.u32 683565275, %v832
    %v836 = vshrl.u32 2475754826, %v833
    %v837 = vor.u32 %v835, %v836
    %v838 = vshll.u32 2475754826, %v832
    %v839 = vshrl.u32 2131351028, %v833
    %v840 = vor.u32 %v838, %v839
    %v841 = vshll.u32 2131351028, %v832
    %v842 = vshrl.u32 2102212464, %v833
    %v843 = vor.u32 %v841, %v842
    %v844 = vshll.u32 2102212464, %v832
    %v845 = vshrl.u32 920167782, %v833
    %v846 = vor.u32 %v844, %v845
    %v847 = vshll.u32 920167782, %v832
    %v848 = vshrl.u32 1326507024, %v833
    %v849 = vor.u32 %v847, %v848
    %vm850 = vcmp.lt.s32.totalorder %v831, 1
    %vm851 = vcmp.lt.s32.totalorder %v831, 2
    %vm852 = vcmp.lt.s32.totalorder %v831, 3
    %vm853 = vcmp.lt.s32.totalorder %v831, 4
    %v854 = vsel %vm850, %v834, %v837
    %v855 = vsel %vm853, %v843, 2102212464
    %v856 = vsel %vm852, %v840, %v855
    %v857 = vsel %vm851, %v854, %v856
    %v858 = vsel %vm850, %v837, %v840
    %v859 = vsel %vm853, %v846, 920167782
    %v860 = vsel %vm852, %v843, %v859
    %v861 = vsel %vm851, %v858, %v860
    %v862 = vsel %vm850, %v840, %v843
    %v863 = vsel %vm853, %v849, 1326507024
    %v864 = vsel %vm852, %v846, %v863
    %v865 = vsel %vm851, %v862, %v864
    %v866 = vshll.u32 %v826, 8
    %v867 = vmul.u32.u64.compose %v866, %v865
    %v868 = vextract.low.u32 %v867
    %v869 = vextract.high.u32 %v867
    %v870 = vmul.u32.u64.compose %v866, %v861
    %v871 = vextract.low.u32 %v870
    %v872 = vextract.high.u32 %v870
    %v873 = vmul.u32 %v866, %v857
    %v874 = vadd.s32 %v869, %v871
    %vm875 = vc.u32 %v869, %v871
    %v876 = vadd.s32 %v872, 1
    %v877 = vsel %vm875, %v876, %v872
    %v878 = vadd.s32 %v873, %v877
    %v879 = vadd.s32 %v878, 536870912
    %v880 = vshrl.u32 %v879, 30
    %v881 = vshll.u32 %v880, 30
    %v882 = vsub.s32 %v878, %v881
    %vm883 = vcmp.lt.s32.totalorder %v882, 0
    %v884 = vsub.s32 0, %v882
    %v885 = vsel %vm883, %v884, %v882
    %v886 = vclz %v885
    %v887 = vsub.s32 %v886, 2
    %vm888 = vcmp.gt.s32.totalorder 0, %v887
    %v889 = vsel %vm888, 0, %v887
    %v890 = vsub.s32 32, %v889
    %v891 = vshll.u32 %v882, %v889
    %v892 = vshrl.u32 %v874, %v890
    %v893 = vor.u32 %v891, %v892
    %v894 = vsub.s32 4294967266, %v889
    %v895 = vadd.s32 %v894, 127
    %v896 = vshll.u32 %v895, 23
    %v897 = vor.u32 4788187, %v896
    %v898 = vand.u32 2147483647, %v897
    %v900 = vcvt.s32.f32 %v893
    %v901 = vmul.f32 %v900, %v898
    %v902 = vxor.u32 %v901, 2147483648
    %v903 = vsel %vm820, %v902, %v901
    %v904 = vsub.s32 4, %v880
    %v905 = vsel %vm820, %v904, %v880
    %v906 = vsel %vm819, %v68, %v903
    %v907 = vsel %vm819, 0, %v905
    %v908 = vcosq.f32.pop %v906
    %v909 = vsinq.f32.pop %v906
    %vm910 = vweird.f32 %v68
    %v911 = vand.u32 %v907, 3
    %vm912 = vcmp.lt.s32.totalorder %v911, 2
    %vm913 = vcmp.eq.s32.totalorder %v911, 0
    %v914 = vxor.u32 %v909, 2147483648
    %v915 = vsel %vm913, %v908, %v914
    %vm916 = vcmp.eq.s32.totalorder %v911, 2
    %v917 = vxor.u32 %v908, 2147483648
    %v918 = vsel %vm916, %v917, %v909
    %v919 = vsel %vm912, %v915, %v918
    %v920 = vsel %vm910, nan, %v919
    %v921 = vand.u32 2147483647, %v73
    %vm922 = vcmp.le.f32.partialorder %v921, 0.7853982
    %vm923 = vcmp.lt.s32.totalorder %v73, 0
    %v924 = vand.u32 %v73, 2139095040
    %v925 = vshrl.u32 %v924, 23
    %v926 = vsub.s32 %v925, 127
    %v927 = vand.u32 2147483647, %v73
    %v928 = vand.u32 %v927, 8388607
    %v929 = vor.u32 %v928, 8388608
    %v930 = vsub.s32 0, %v929
    %v931 = vadd.s32 %v926, 1
    %vm932 = vcmp.gt.s32.totalorder %v931, 0
    %v933 = vsel %vm932, %v931, 0
    %v934 = vshrl.u32 %v933, 5
    %v935 = vand.u32 %v933, 31
    %v936 = vsub.s32 32, %v935
    %v937 = vshrl.u32 683565275, %v936
    %v938 = vshll.u32 683565275, %v935
    %v939 = vshrl.u32 2475754826, %v936
    %v940 = vor.u32 %v938, %v939
    %v941 = vshll.u32 2475754826, %v935
    %v942 = vshrl.u32 2131351028, %v936
    %v943 = vor.u32 %v941, %v942
    %v944 = vshll.u32 2131351028, %v935
    %v945 = vshrl.u32 2102212464, %v936
    %v946 = vor.u32 %v944, %v945
    %v947 = vshll.u32 2102212464, %v935
    %v948 = vshrl.u32 920167782, %v936
    %v949 = vor.u32 %v947, %v948
    %v950 = vshll.u32 920167782, %v935
    %v951 = vshrl.u32 1326507024, %v936
    %v952 = vor.u32 %v950, %v951
    %vm953 = vcmp.lt.s32.totalorder %v934, 1
    %vm954 = vcmp.lt.s32.totalorder %v934, 2
    %vm955 = vcmp.lt.s32.totalorder %v934, 3
    %vm956 = vcmp.lt.s32.totalorder %v934, 4
    %v957 = vsel %vm953, %v937, %v940
    %v958 = vsel %vm956, %v946, 2102212464
    %v959 = vsel %vm955, %v943, %v958
    %v960 = vsel %vm954, %v957, %v959
    %v961 = vsel %vm953, %v940, %v943
    %v962 = vsel %vm956, %v949, 920167782
    %v963 = vsel %vm955, %v946, %v962
    %v964 = vsel %vm954, %v961, %v963
    %v965 = vsel %vm953, %v943, %v946
    %v966 = vsel %vm956, %v952, 1326507024
    %v967 = vsel %vm955, %v949, %v966
    %v968 = vsel %vm954, %v965, %v967
    %v969 = vshll.u32 %v929, 8
    %v970 = vmul.u32.u64.compose %v969, %v968
    %v971 = vextract.low.u32 %v970
    %v972 = vextract.high.u32 %v970
    %v973 = vmul.u32.u64.compose %v969, %v964
    %v974 = vextract.low.u32 %v973
    %v975 = vextract.high.u32 %v973
    %v976 = vmul.u32 %v969, %v960
    %v977 = vadd.s32 %v972, %v974
    %vm978 = vc.u32 %v972, %v974
    %v979 = vadd.s32 %v975, 1
    %v980 = vsel %vm978, %v979, %v975
    %v981 = vadd.s32 %v976, %v980
    %v982 = vadd.s32 %v981, 536870912
    %v983 = vshrl.u32 %v982, 30
    %v984 = vshll.u32 %v983, 30
    %v985 = vsub.s32 %v981, %v984
    %vm986 = vcmp.lt.s32.totalorder %v985, 0
    %v987 = vsub.s32 0, %v985
    %v988 = vsel %vm986, %v987, %v985
    %v989 = vclz %v988
    %v990 = vsub.s32 %v989, 2
    %vm991 = vcmp.gt.s32.totalorder 0, %v990
    %v992 = vsel %vm991, 0, %v990
    %v993 = vsub.s32 32, %v992
    %v994 = vshll.u32 %v985, %v992
    %v995 = vshrl.u32 %v977, %v993
    %v996 = vor.u32 %v994, %v995
    %v997 = vsub.s32 4294967266, %v992
    %v998 = vadd.s32 %v997, 127
    %v999 = vshll.u32 %v998, 23
    %v1000 = vor.u32 4788187, %v999
    %v1001 = vand.u32 2147483647, %v1000
    %v1003 = vcvt.s32.f32 %v996
    %v1004 = vmul.f32 %v1003, %v1001
    %v1005 = vxor.u32 %v1004, 2147483648
    %v1006 = vsel %vm923, %v1005, %v1004
    %v1007 = vsub.s32 4, %v983
    %v1008 = vsel %vm923, %v1007, %v983
    %v1009 = vsel %vm922, %v73, %v1006
    %v1010 = vsel %vm922, 0, %v1008
    %v1011 = vcosq.f32.pop %v1009
    %v1012 = vsinq.f32.pop %v1009
    %vm1013 = vweird.f32 %v73
    %v1014 = vand.u32 %v1010, 3
    %vm1015 = vcmp.lt.s32.totalorder %v1014, 2
    %vm1016 = vcmp.eq.s32.totalorder %v1014, 0
    %v1017 = vxor.u32 %v1012, 2147483648
    %v1018 = vsel %vm1016, %v1011, %v1017
    %vm1019 = vcmp.eq.s32.totalorder %v1014, 2
    %v1020 = vxor.u32 %v1011, 2147483648
    %v1021 = vsel %vm1019, %v1020, %v1012
    %v1022 = vsel %vm1015, %v1018, %v1021
    %v1023 = vsel %vm1013, nan, %v1022
    %v1024 = vand.u32 2147483647, %v74
    %vm1025 = vcmp.le.f32.partialorder %v1024, 0.7853982
    %vm1026 = vcmp.lt.s32.totalorder %v74, 0
    %v1027 = vand.u32 %v74, 2139095040
    %v1028 = vshrl.u32 %v1027, 23
    %v1029 = vsub.s32 %v1028, 127
    %v1030 = vand.u32 2147483647, %v74
    %v1031 = vand.u32 %v1030, 8388607
    %v1032 = vor.u32 %v1031, 8388608
    %v1033 = vsub.s32 0, %v1032
    %v1034 = vadd.s32 %v1029, 1
    %vm1035 = vcmp.gt.s32.totalorder %v1034, 0
    %v1036 = vsel %vm1035, %v1034, 0
    %v1037 = vshrl.u32 %v1036, 5
    %v1038 = vand.u32 %v1036, 31
    %v1039 = vsub.s32 32, %v1038
    %v1040 = vshrl.u32 683565275, %v1039
    %v1041 = vshll.u32 683565275, %v1038
    %v1042 = vshrl.u32 2475754826, %v1039
    %v1043 = vor.u32 %v1041, %v1042
    %v1044 = vshll.u32 2475754826, %v1038
    %v1045 = vshrl.u32 2131351028, %v1039
    %v1046 = vor.u32 %v1044, %v1045
    %v1047 = vshll.u32 2131351028, %v1038
    %v1048 = vshrl.u32 2102212464, %v1039
    %v1049 = vor.u32 %v1047, %v1048
    %v1050 = vshll.u32 2102212464, %v1038
    %v1051 = vshrl.u32 920167782, %v1039
    %v1052 = vor.u32 %v1050, %v1051
    %v1053 = vshll.u32 920167782, %v1038
    %v1054 = vshrl.u32 1326507024, %v1039
    %v1055 = vor.u32 %v1053, %v1054
    %vm1056 = vcmp.lt.s32.totalorder %v1037, 1
    %vm1057 = vcmp.lt.s32.totalorder %v1037, 2
    %vm1058 = vcmp.lt.s32.totalorder %v1037, 3
    %vm1059 = vcmp.lt.s32.totalorder %v1037, 4
    %v1060 = vsel %vm1056, %v1040, %v1043
    %v1061 = vsel %vm1059, %v1049, 2102212464
    %v1062 = vsel %vm1058, %v1046, %v1061
    %v1063 = vsel %vm1057, %v1060, %v1062
    %v1064 = vsel %vm1056, %v1043, %v1046
    %v1065 = vsel %vm1059, %v1052, 920167782
    %v1066 = vsel %vm1058, %v1049, %v1065
    %v1067 = vsel %vm1057, %v1064, %v1066
    %v1068 = vsel %vm1056, %v1046, %v1049
    %v1069 = vsel %vm1059, %v1055, 1326507024
    %v1070 = vsel %vm1058, %v1052, %v1069
    %v1071 = vsel %vm1057, %v1068, %v1070
    %v1072 = vshll.u32 %v1032, 8
    %v1073 = vmul.u32.u64.compose %v1072, %v1071
    %v1074 = vextract.low.u32 %v1073
    %v1075 = vextract.high.u32 %v1073
    %v1076 = vmul.u32.u64.compose %v1072, %v1067
    %v1077 = vextract.low.u32 %v1076
    %v1078 = vextract.high.u32 %v1076
    %v1079 = vmul.u32 %v1072, %v1063
    %v1080 = vadd.s32 %v1075, %v1077
    %vm1081 = vc.u32 %v1075, %v1077
    %v1082 = vadd.s32 %v1078, 1
    %v1083 = vsel %vm1081, %v1082, %v1078
    %v1084 = vadd.s32 %v1079, %v1083
    %v1085 = vadd.s32 %v1084, 536870912
    %v1086 = vshrl.u32 %v1085, 30
    %v1087 = vshll.u32 %v1086, 30
    %v1088 = vsub.s32 %v1084, %v1087
    %vm1089 = vcmp.lt.s32.totalorder %v1088, 0
    %v1090 = vsub.s32 0, %v1088
    %v1091 = vsel %vm1089, %v1090, %v1088
    %v1092 = vclz %v1091
    %v1093 = vsub.s32 %v1092, 2
    %vm1094 = vcmp.gt.s32.totalorder 0, %v1093
    %v1095 = vsel %vm1094, 0, %v1093
    %v1096 = vsub.s32 32, %v1095
    %v1097 = vshll.u32 %v1088, %v1095
    %v1098 = vshrl.u32 %v1080, %v1096
    %v1099 = vor.u32 %v1097, %v1098
    %v1100 = vsub.s32 4294967266, %v1095
    %v1101 = vadd.s32 %v1100, 127
    %v1102 = vshll.u32 %v1101, 23
    %v1103 = vor.u32 4788187, %v1102
    %v1104 = vand.u32 2147483647, %v1103
    %v1106 = vcvt.s32.f32 %v1099
    %v1107 = vmul.f32 %v1106, %v1104
    %v1108 = vxor.u32 %v1107, 2147483648
    %v1109 = vsel %vm1026, %v1108, %v1107
    %v1110 = vsub.s32 4, %v1086
    %v1111 = vsel %vm1026, %v1110, %v1086
    %v1112 = vsel %vm1025, %v74, %v1109
    %v1113 = vsel %vm1025, 0, %v1111
    %v1114 = vcosq.f32.pop %v1112
    %v1115 = vsinq.f32.pop %v1112
    %vm1116 = vweird.f32 %v74
    %v1117 = vand.u32 %v1113, 3
    %vm1118 = vcmp.lt.s32.totalorder %v1117, 2
    %vm1119 = vcmp.eq.s32.totalorder %v1117, 0
    %v1120 = vxor.u32 %v1115, 2147483648
    %v1121 = vsel %vm1119, %v1114, %v1120
    %vm1122 = vcmp.eq.s32.totalorder %v1117, 2
    %v1123 = vxor.u32 %v1114, 2147483648
    %v1124 = vsel %vm1122, %v1123, %v1115
    %v1125 = vsel %vm1118, %v1121, %v1124
    %v1126 = vsel %vm1116, nan, %v1125
    %v1127 = vand.u32 2147483647, %v89
    %vm1128 = vcmp.le.f32.partialorder %v1127, 0.7853982
    %vm1129 = vcmp.lt.s32.totalorder %v89, 0
    %v1130 = vand.u32 %v89, 2139095040
    %v1131 = vshrl.u32 %v1130, 23
    %v1132 = vsub.s32 %v1131, 127
    %v1133 = vand.u32 2147483647, %v89
    %v1134 = vand.u32 %v1133, 8388607
    %v1135 = vor.u32 %v1134, 8388608
    %v1136 = vsub.s32 0, %v1135
    %v1137 = vadd.s32 %v1132, 1
    %vm1138 = vcmp.gt.s32.totalorder %v1137, 0
    %v1139 = vsel %vm1138, %v1137, 0
    %v1140 = vshrl.u32 %v1139, 5
    %v1141 = vand.u32 %v1139, 31
    %v1142 = vsub.s32 32, %v1141
    %v1143 = vshrl.u32 683565275, %v1142
    %v1144 = vshll.u32 683565275, %v1141
    %v1145 = vshrl.u32 2475754826, %v1142
    %v1146 = vor.u32 %v1144, %v1145
    %v1147 = vshll.u32 2475754826, %v1141
    %v1148 = vshrl.u32 2131351028, %v1142
    %v1149 = vor.u32 %v1147, %v1148
    %v1150 = vshll.u32 2131351028, %v1141
    %v1151 = vshrl.u32 2102212464, %v1142
    %v1152 = vor.u32 %v1150, %v1151
    %v1153 = vshll.u32 2102212464, %v1141
    %v1154 = vshrl.u32 920167782, %v1142
    %v1155 = vor.u32 %v1153, %v1154
    %v1156 = vshll.u32 920167782, %v1141
    %v1157 = vshrl.u32 1326507024, %v1142
    %v1158 = vor.u32 %v1156, %v1157
    %vm1159 = vcmp.lt.s32.totalorder %v1140, 1
    %vm1160 = vcmp.lt.s32.totalorder %v1140, 2
    %vm1161 = vcmp.lt.s32.totalorder %v1140, 3
    %vm1162 = vcmp.lt.s32.totalorder %v1140, 4
    %v1163 = vsel %vm1159, %v1143, %v1146
    %v1164 = vsel %vm1162, %v1152, 2102212464
    %v1165 = vsel %vm1161, %v1149, %v1164
    %v1166 = vsel %vm1160, %v1163, %v1165
    %v1167 = vsel %vm1159, %v1146, %v1149
    %v1168 = vsel %vm1162, %v1155, 920167782
    %v1169 = vsel %vm1161, %v1152, %v1168
    %v1170 = vsel %vm1160, %v1167, %v1169
    %v1171 = vsel %vm1159, %v1149, %v1152
    %v1172 = vsel %vm1162, %v1158, 1326507024
    %v1173 = vsel %vm1161, %v1155, %v1172
    %v1174 = vsel %vm1160, %v1171, %v1173
    %v1175 = vshll.u32 %v1135, 8
    %v1176 = vmul.u32.u64.compose %v1175, %v1174
    %v1177 = vextract.low.u32 %v1176
    %v1178 = vextract.high.u32 %v1176
    %v1179 = vmul.u32.u64.compose %v1175, %v1170
    %v1180 = vextract.low.u32 %v1179
    %v1181 = vextract.high.u32 %v1179
    %v1182 = vmul.u32 %v1175, %v1166
    %v1183 = vadd.s32 %v1178, %v1180
    %vm1184 = vc.u32 %v1178, %v1180
    %v1185 = vadd.s32 %v1181, 1
    %v1186 = vsel %vm1184, %v1185, %v1181
    %v1187 = vadd.s32 %v1182, %v1186
    %v1188 = vadd.s32 %v1187, 536870912
    %v1189 = vshrl.u32 %v1188, 30
    %v1190 = vshll.u32 %v1189, 30
    %v1191 = vsub.s32 %v1187, %v1190
    %vm1192 = vcmp.lt.s32.totalorder %v1191, 0
    %v1193 = vsub.s32 0, %v1191
    %v1194 = vsel %vm1192, %v1193, %v1191
    %v1195 = vclz %v1194
    %v1196 = vsub.s32 %v1195, 2
    %vm1197 = vcmp.gt.s32.totalorder 0, %v1196
    %v1198 = vsel %vm1197, 0, %v1196
    %v1199 = vsub.s32 32, %v1198
    %v1200 = vshll.u32 %v1191, %v1198
    %v1201 = vshrl.u32 %v1183, %v1199
    %v1202 = vor.u32 %v1200, %v1201
    %v1203 = vsub.s32 4294967266, %v1198
    %v1204 = vadd.s32 %v1203, 127
    %v1205 = vshll.u32 %v1204, 23
    %v1206 = vor.u32 4788187, %v1205
    %v1207 = vand.u32 2147483647, %v1206
    %v1209 = vcvt.s32.f32 %v1202
    %v1210 = vmul.f32 %v1209, %v1207
    %v1211 = vxor.u32 %v1210, 2147483648
    %v1212 = vsel %vm1129, %v1211, %v1210
    %v1213 = vsub.s32 4, %v1189
    %v1214 = vsel %vm1129, %v1213, %v1189
    %v1215 = vsel %vm1128, %v89, %v1212
    %v1216 = vsel %vm1128, 0, %v1214
    %v1217 = vcosq.f32.pop %v1215
    %v1218 = vsinq.f32.pop %v1215
    %vm1219 = vweird.f32 %v89
    %v1220 = vand.u32 %v1216, 3
    %vm1221 = vcmp.lt.s32.totalorder %v1220, 2
    %vm1222 = vcmp.eq.s32.totalorder %v1220, 0
    %v1223 = vxor.u32 %v1218, 2147483648
    %v1224 = vsel %vm1222, %v1217, %v1223
    %vm1225 = vcmp.eq.s32.totalorder %v1220, 2
    %v1226 = vxor.u32 %v1217, 2147483648
    %v1227 = vsel %vm1225, %v1226, %v1218
    %v1228 = vsel %vm1221, %v1224, %v1227
    %v1229 = vsel %vm1219, nan, %v1228
    %v1230 = vand.u32 2147483647, %v90
    %vm1231 = vcmp.le.f32.partialorder %v1230, 0.7853982
    %vm1232 = vcmp.lt.s32.totalorder %v90, 0
    %v1233 = vand.u32 %v90, 2139095040
    %v1234 = vshrl.u32 %v1233, 23
    %v1235 = vsub.s32 %v1234, 127
    %v1236 = vand.u32 2147483647, %v90
    %v1237 = vand.u32 %v1236, 8388607
    %v1238 = vor.u32 %v1237, 8388608
    %v1239 = vsub.s32 0, %v1238
    %v1240 = vadd.s32 %v1235, 1
    %vm1241 = vcmp.gt.s32.totalorder %v1240, 0
    %v1242 = vsel %vm1241, %v1240, 0
    %v1243 = vshrl.u32 %v1242, 5
    %v1244 = vand.u32 %v1242, 31
    %v1245 = vsub.s32 32, %v1244
    %v1246 = vshrl.u32 683565275, %v1245
    %v1247 = vshll.u32 683565275, %v1244
    %v1248 = vshrl.u32 2475754826, %v1245
    %v1249 = vor.u32 %v1247, %v1248
    %v1250 = vshll.u32 2475754826, %v1244
    %v1251 = vshrl.u32 2131351028, %v1245
    %v1252 = vor.u32 %v1250, %v1251
    %v1253 = vshll.u32 2131351028, %v1244
    %v1254 = vshrl.u32 2102212464, %v1245
    %v1255 = vor.u32 %v1253, %v1254
    %v1256 = vshll.u32 2102212464, %v1244
    %v1257 = vshrl.u32 920167782, %v1245
    %v1258 = vor.u32 %v1256, %v1257
    %v1259 = vshll.u32 920167782, %v1244
    %v1260 = vshrl.u32 1326507024, %v1245
    %v1261 = vor.u32 %v1259, %v1260
    %vm1262 = vcmp.lt.s32.totalorder %v1243, 1
    %vm1263 = vcmp.lt.s32.totalorder %v1243, 2
    %vm1264 = vcmp.lt.s32.totalorder %v1243, 3
    %vm1265 = vcmp.lt.s32.totalorder %v1243, 4
    %v1266 = vsel %vm1262, %v1246, %v1249
    %v1267 = vsel %vm1265, %v1255, 2102212464
    %v1268 = vsel %vm1264, %v1252, %v1267
    %v1269 = vsel %vm1263, %v1266, %v1268
    %v1270 = vsel %vm1262, %v1249, %v1252
    %v1271 = vsel %vm1265, %v1258, 920167782
    %v1272 = vsel %vm1264, %v1255, %v1271
    %v1273 = vsel %vm1263, %v1270, %v1272
    %v1274 = vsel %vm1262, %v1252, %v1255
    %v1275 = vsel %vm1265, %v1261, 1326507024
    %v1276 = vsel %vm1264, %v1258, %v1275
    %v1277 = vsel %vm1263, %v1274, %v1276
    %v1278 = vshll.u32 %v1238, 8
    %v1279 = vmul.u32.u64.compose %v1278, %v1277
    %v1280 = vextract.low.u32 %v1279
    %v1281 = vextract.high.u32 %v1279
    %v1282 = vmul.u32.u64.compose %v1278, %v1273
    %v1283 = vextract.low.u32 %v1282
    %v1284 = vextract.high.u32 %v1282
    %v1285 = vmul.u32 %v1278, %v1269
    %v1286 = vadd.s32 %v1281, %v1283
    %vm1287 = vc.u32 %v1281, %v1283
    %v1288 = vadd.s32 %v1284, 1
    %v1289 = vsel %vm1287, %v1288, %v1284
    %v1290 = vadd.s32 %v1285, %v1289
    %v1291 = vadd.s32 %v1290, 536870912
    %v1292 = vshrl.u32 %v1291, 30
    %v1293 = vshll.u32 %v1292, 30
    %v1294 = vsub.s32 %v1290, %v1293
    %vm1295 = vcmp.lt.s32.totalorder %v1294, 0
    %v1296 = vsub.s32 0, %v1294
    %v1297 = vsel %vm1295, %v1296, %v1294
    %v1298 = vclz %v1297
    %v1299 = vsub.s32 %v1298, 2
    %vm1300 = vcmp.gt.s32.totalorder 0, %v1299
    %v1301 = vsel %vm1300, 0, %v1299
    %v1302 = vsub.s32 32, %v1301
    %v1303 = vshll.u32 %v1294, %v1301
    %v1304 = vshrl.u32 %v1286, %v1302
    %v1305 = vor.u32 %v1303, %v1304
    %v1306 = vsub.s32 4294967266, %v1301
    %v1307 = vadd.s32 %v1306, 127
    %v1308 = vshll.u32 %v1307, 23
    %v1309 = vor.u32 4788187, %v1308
    %v1310 = vand.u32 2147483647, %v1309
    %v1312 = vcvt.s32.f32 %v1305
    %v1313 = vmul.f32 %v1312, %v1310
    %v1314 = vxor.u32 %v1313, 2147483648
    %v1315 = vsel %vm1232, %v1314, %v1313
    %v1316 = vsub.s32 4, %v1292
    %v1317 = vsel %vm1232, %v1316, %v1292
    %v1318 = vsel %vm1231, %v90, %v1315
    %v1319 = vsel %vm1231, 0, %v1317
    %v1320 = vcosq.f32.pop %v1318
    %v1321 = vsinq.f32.pop %v1318
    %vm1322 = vweird.f32 %v90
    %v1323 = vand.u32 %v1319, 3
    %vm1324 = vcmp.lt.s32.totalorder %v1323, 2
    %vm1325 = vcmp.eq.s32.totalorder %v1323, 0
    %v1326 = vxor.u32 %v1321, 2147483648
    %v1327 = vsel %vm1325, %v1320, %v1326
    %vm1328 = vcmp.eq.s32.totalorder %v1323, 2
    %v1329 = vxor.u32 %v1320, 2147483648
    %v1330 = vsel %vm1328, %v1329, %v1321
    %v1331 = vsel %vm1324, %v1327, %v1330
    %v1332 = vsel %vm1322, nan, %v1331
    %v1333 = vld [vmem:[%s3] sm:$0xff]
    %v1334 = vld [vmem:[%s3 + $0x8] sm:$0xff]
    %v1335 = vld [vmem:[%s3 + $0x10] sm:$0xff]
    %v1336 = vld [vmem:[%s3 + $0x18] sm:$0xff]
    %v1337 = vld [vmem:[%s4] sm:$0xff]
    %v1338 = vld [vmem:[%s4 + $0x8] sm:$0xff]
    %v1339 = vld [vmem:[%s4 + $0x10] sm:$0xff]
    %v1340 = vld [vmem:[%s4 + $0x18] sm:$0xff]
    %vm1341 = vcmask 392192
    %v1343 = vsel %vm1341, %v1337, 0
    %v1346 = vsel %vm1341, %v1338, 0
    %v1349 = vsel %vm1341, %v1339, 0
    %v1352 = vsel %vm1341, %v1340, 0
    %1354 = vmatprep.subr.mxu0 0.0
    %1355 = vmatpush1.msra.mxu0 %v817
    %1356 = vmatprep.subr.mxu0 0.0
    %1357 = vmatpush1.msra.mxu0 %v920
    %1358 = vmatprep.subr.mxu0 0.0
    %1359 = vmatpush1.msra.mxu0 %v1023
    %1360 = vmatprep.subr.mxu0 0.0
    %1361 = vmatpush1.msra.mxu0 %v1126
    %1362 = vmatprep.subr.mxu0 0.0
    %1363 = vmatpush1.msra.mxu0 %v1229
    %1364 = vmatprep.subr.mxu0 0.0
    %1365 = vmatpush1.msra.mxu0 %v1332
    %1366 = vmatprep.subr.mxu0 0.0
    %1367 = vmatpush1.msra.mxu0 0.0
    %1368 = vmatprep.subr.mxu0 0.0
    %1369 = vmatpush1.msra.mxu0 0.0
    %1370 = vmatprep.subr.mxu0 0.0
    %1371 = vmatpush1.msra.mxu0 0.0
    %1372 = vmatprep.subr.mxu0 0.0
    %1373 = vmatpush1.msra.mxu0 0.0
    %1374 = vmatprep.subr.mxu0 0.0
    %1375 = vmatpush1.msra.mxu0 0.0
    %1376 = vmatprep.subr.mxu0 0.0
    %1377 = vmatpush1.msra.mxu0 0.0
    %1378 = vmatprep.subr.mxu0 0.0
    %1379 = vmatpush1.msra.mxu0 0.0
    %1380 = vmatprep.subr.mxu0 0.0
    %1381 = vmatpush1.msra.mxu0 0.0
    %1382 = vmatprep.subr.mxu0 0.0
    %1383 = vmatpush1.msra.mxu0 0.0
    %1384 = vmatprep.subr.mxu0 0.0
    %1385 = vmatpush1.msra.mxu0 0.0
    %1386 = vmatprep.subr.mxu0 0.0
    %1387 = vmatpush1.msra.mxu0 0.0
    %1388 = vmatprep.subr.mxu0 0.0
    %1389 = vmatpush1.msra.mxu0 0.0
    %1390 = vmatprep.subr.mxu0 0.0
    %1391 = vmatpush1.msra.mxu0 0.0
    %1392 = vmatprep.subr.mxu0 0.0
    %1393 = vmatpush1.msra.mxu0 0.0
    %1394 = vmatprep.subr.mxu0 0.0
    %1395 = vmatpush1.msra.mxu0 0.0
    %1396 = vmatprep.subr.mxu0 0.0
    %1397 = vmatpush1.msra.mxu0 0.0
    %1398 = vmatprep.subr.mxu0 0.0
    %1399 = vmatpush1.msra.mxu0 0.0
    %1400 = vmatprep.subr.mxu0 0.0
    %1401 = vmatpush1.msra.mxu0 0.0
    %1402 = vmatprep.subr.mxu0 0.0
    %1403 = vmatpush1.msra.mxu0 0.0
    %1404 = vmatprep.subr.mxu0 0.0
    %1405 = vmatpush1.msra.mxu0 0.0
    %1406 = vmatprep.subr.mxu0 0.0
    %1407 = vmatpush1.msra.mxu0 0.0
    %1408 = vmatprep.subr.mxu0 0.0
    %1409 = vmatpush1.msra.mxu0 0.0
    %1410 = vmatprep.subr.mxu0 0.0
    %1411 = vmatpush1.msra.mxu0 0.0
    %1412 = vmatprep.subr.mxu0 0.0
    %1413 = vmatpush1.msra.mxu0 0.0
    %1414 = vmatprep.subr.mxu0 0.0
    %1415 = vmatpush1.msra.mxu0 0.0
    %1416 = vmatprep.subr.mxu0 0.0
    %1417 = vmatpush1.msra.mxu0 0.0
    %1418 = vmatprep.mubr.f32.mxu0 0.0
    %1419 = vmatmul.mubr.f32.gmra.mrb[0].mxu0 %v1343
    %v1420 = vpop.f32.mrb[0].mxu0
    %v1421 = vadd.f32 0.0, %v1420
    %v1422 = vpop.f32.mrb[0].mxu0
    %1423 = vmatprep.mubr.f32.mxu0 0.0
    %1424 = vmatmul.mubr.f32.gmra.mrb[0].mxu0 %v1346
    %v1425 = vpop.f32.mrb[0].mxu0
    %v1426 = vadd.f32 0.0, %v1425
    %v1427 = vpop.f32.mrb[0].mxu0
    %1428 = vmatprep.mubr.f32.mxu0 0.0
    %1429 = vmatmul.mubr.f32.gmra.mrb[0].mxu0 %v1349
    %v1430 = vpop.f32.mrb[0].mxu0
    %v1431 = vadd.f32 0.0, %v1430
    %v1432 = vpop.f32.mrb[0].mxu0
    %1433 = vmatprep.mubr.f32.mxu0 0.0
    %1434 = vmatmul.mubr.f32.gmra.mrb[0].mxu0 %v1352
    %v1435 = vpop.f32.mrb[0].mxu0
    %v1436 = vadd.f32 0.0, %v1435
    %v1437 = vpop.f32.mrb[0].mxu0
    %1438 = vdwg.mxu0
    %v1440 = vsel %vm1341, %v1333, 0
    %v1443 = vsel %vm1341, %v1334, 0
    %v1446 = vsel %vm1341, %v1335, 0
    %v1449 = vsel %vm1341, %v1336, 0
    %1451 = vmatprep.subr.mxu0 0.0
    %1452 = vmatpush1.msra.mxu0 %v194
    %1453 = vmatprep.subr.mxu0 0.0
    %1454 = vmatpush1.msra.mxu0 %v298
    %1455 = vmatprep.subr.mxu0 0.0
    %1456 = vmatpush1.msra.mxu0 %v402
    %1457 = vmatprep.subr.mxu0 0.0
    %1458 = vmatpush1.msra.mxu0 %v506
    %1459 = vmatprep.subr.mxu0 0.0
    %1460 = vmatpush1.msra.mxu0 %v610
    %1461 = vmatprep.subr.mxu0 0.0
    %1462 = vmatpush1.msra.mxu0 %v714
    %1463 = vmatprep.subr.mxu0 0.0
    %1464 = vmatpush1.msra.mxu0 0.0
    %1465 = vmatprep.subr.mxu0 0.0
    %1466 = vmatpush1.msra.mxu0 0.0
    %1467 = vmatprep.subr.mxu0 0.0
    %1468 = vmatpush1.msra.mxu0 0.0
    %1469 = vmatprep.subr.mxu0 0.0
    %1470 = vmatpush1.msra.mxu0 0.0
    %1471 = vmatprep.subr.mxu0 0.0
    %1472 = vmatpush1.msra.mxu0 0.0
    %1473 = vmatprep.subr.mxu0 0.0
    %1474 = vmatpush1.msra.mxu0 0.0
    %1475 = vmatprep.subr.mxu0 0.0
    %1476 = vmatpush1.msra.mxu0 0.0
    %1477 = vmatprep.subr.mxu0 0.0
    %1478 = vmatpush1.msra.mxu0 0.0
    %1479 = vmatprep.subr.mxu0 0.0
    %1480 = vmatpush1.msra.mxu0 0.0
    %1481 = vmatprep.subr.mxu0 0.0
    %1482 = vmatpush1.msra.mxu0 0.0
    %1483 = vmatprep.subr.mxu0 0.0
    %1484 = vmatpush1.msra.mxu0 0.0
    %1485 = vmatprep.subr.mxu0 0.0
    %1486 = vmatpush1.msra.mxu0 0.0
    %1487 = vmatprep.subr.mxu0 0.0
    %1488 = vmatpush1.msra.mxu0 0.0
    %1489 = vmatprep.subr.mxu0 0.0
    %1490 = vmatpush1.msra.mxu0 0.0
    %1491 = vmatprep.subr.mxu0 0.0
    %1492 = vmatpush1.msra.mxu0 0.0
    %1493 = vmatprep.subr.mxu0 0.0
    %1494 = vmatpush1.msra.mxu0 0.0
    %1495 = vmatprep.subr.mxu0 0.0
    %1496 = vmatpush1.msra.mxu0 0.0
    %1497 = vmatprep.subr.mxu0 0.0
    %1498 = vmatpush1.msra.mxu0 0.0
    %1499 = vmatprep.subr.mxu0 0.0
    %1500 = vmatpush1.msra.mxu0 0.0
    %1501 = vmatprep.subr.mxu0 0.0
    %1502 = vmatpush1.msra.mxu0 0.0
    %1503 = vmatprep.subr.mxu0 0.0
    %1504 = vmatpush1.msra.mxu0 0.0
    %1505 = vmatprep.subr.mxu0 0.0
    %1506 = vmatpush1.msra.mxu0 0.0
    %1507 = vmatprep.subr.mxu0 0.0
    %1508 = vmatpush1.msra.mxu0 0.0
    %1509 = vmatprep.subr.mxu0 0.0
    %1510 = vmatpush1.msra.mxu0 0.0
    %1511 = vmatprep.subr.mxu0 0.0
    %1512 = vmatpush1.msra.mxu0 0.0
    %1513 = vmatprep.subr.mxu0 0.0
    %1514 = vmatpush1.msra.mxu0 0.0
    %1515 = vmatprep.mubr.f32.mxu0 0.0
    %1516 = vmatmul.mubr.f32.gmra.mrb[0].mxu0 %v1440
    %v1517 = vpop.f32.mrb[0].mxu0
    %v1518 = vadd.f32 %v1421, %v1517
    %v1519 = vpop.f32.mrb[0].mxu0
    %1520 = vmatprep.mubr.f32.mxu0 0.0
    %1521 = vmatmul.mubr.f32.gmra.mrb[0].mxu0 %v1443
    %v1522 = vpop.f32.mrb[0].mxu0
    %v1523 = vadd.f32 %v1426, %v1522
    %v1524 = vpop.f32.mrb[0].mxu0
    %1525 = vmatprep.mubr.f32.mxu0 0.0
    %1526 = vmatmul.mubr.f32.gmra.mrb[0].mxu0 %v1446
    %v1527 = vpop.f32.mrb[0].mxu0
    %v1528 = vadd.f32 %v1431, %v1527
    %v1529 = vpop.f32.mrb[0].mxu0
    %1530 = vmatprep.mubr.f32.mxu0 0.0
    %1531 = vmatmul.mubr.f32.gmra.mrb[0].mxu0 %v1449
    %v1532 = vpop.f32.mrb[0].mxu0
    %v1533 = vadd.f32 %v1436, %v1532
    %v1534 = vpop.f32.mrb[0].mxu0
    %1535 = vdwg.mxu0
    %v1536 = vld [vmem:[%s5] sm:$0xff]
    %v1537 = vld [vmem:[%s5 + $0x8] sm:$0xff]
    %v1538 = vld [vmem:[%s5 + $0x10] sm:$0xff]
    %v1539 = vld [vmem:[%s5 + $0x18] sm:$0xff]
    %1541 = vset.pattern.permute.xlu0 0
    %1542 = vperm.xlu0 %1541, %v1536
    %v1543 = vpop.permute.xlu0 %1542
    %1546 = vset.pattern.permute.xlu0 0
    %1547 = vperm.xlu0 %1546, %v1537
    %v1548 = vpop.permute.xlu0 %1547
    %1551 = vset.pattern.permute.xlu0 0
    %1552 = vperm.xlu0 %1551, %v1538
    %v1553 = vpop.permute.xlu0 %1552
    %1556 = vset.pattern.permute.xlu0 0
    %1557 = vperm.xlu0 %1556, %v1539
    %v1558 = vpop.permute.xlu0 %1557
    %v1560 = vadd.f32 %v1518, %v1543
    %v1561 = vadd.f32 %v1523, %v1548
    %v1562 = vadd.f32 %v1528, %v1553
    %v1563 = vadd.f32 %v1533, %v1558
    %v1564 = vmul.f32 %v1560, 0.70710677
    %v1565 = vmul.f32 %v1561, 0.70710677
    %v1566 = vmul.f32 %v1562, 0.70710677
    %v1567 = vmul.f32 %v1563, 0.70710677
    %v1568 = verf.f32.pop %v1560
    %v1569 = verf.f32.pop %v1561
    %v1570 = verf.f32.pop %v1562
    %v1571 = verf.f32.pop %v1563
    %v1572 = vadd.f32 %v1568, 1.0
    %v1573 = vadd.f32 %v1569, 1.0
    %v1574 = vadd.f32 %v1570, 1.0
    %v1575 = vadd.f32 %v1571, 1.0
    %v1576 = vmul.f32 %v1564, %v1572
    %v1577 = vmul.f32 %v1565, %v1573
    %v1578 = vmul.f32 %v1566, %v1574
    %v1579 = vmul.f32 %v1567, %v1575
    %v1580 = vld [vmem:[%s6] sm:$0xff]
    %v1581 = vld [vmem:[%s6 + $0x8] sm:$0xff]
    %v1582 = vld [vmem:[%s6 + $0x10] sm:$0xff]
    %v1583 = vld [vmem:[%s6 + $0x18] sm:$0xff]
    %v1584 = vld [vmem:[%s7] sm:$0xff]
    %v1585 = vld [vmem:[%s7 + $0x8] sm:$0xff]
    %v1586 = vld [vmem:[%s7 + $0x10] sm:$0xff]
    %v1587 = vld [vmem:[%s7 + $0x18] sm:$0xff]
    %1589 = vset.pattern.permute.xlu0 0
    %1590 = vperm.xlu0 %1589, %v1584
    %v1591 = vpop.permute.xlu0 %1590
    %1594 = vset.pattern.permute.xlu0 0
    %1595 = vperm.xlu0 %1594, %v1585
    %v1596 = vpop.permute.xlu0 %1595
    %1599 = vset.pattern.permute.xlu0 0
    %1600 = vperm.xlu0 %1599, %v1586
    %v1601 = vpop.permute.xlu0 %1600
    %1604 = vset.pattern.permute.xlu0 0
    %1605 = vperm.xlu0 %1604, %v1587
    %v1606 = vpop.permute.xlu0 %1605
    %vm1608 = vcmask 261120
    %v1610 = vsel %vm1608, %v1580, 0
    %v1613 = vsel %vm1608, %v1581, 0
    %v1616 = vsel %vm1608, %v1582, 0
    %v1619 = vsel %vm1608, %v1583, 0
    %1621 = vmatprep.subr.mxu0 0.0
    %1622 = vmatpush1.msra.mxu0 %v1576
    %1623 = vmatprep.subr.mxu0 0.0
    %1624 = vmatpush1.msra.mxu0 %v1577
    %1625 = vmatprep.subr.mxu0 0.0
    %1626 = vmatpush1.msra.mxu0 %v1578
    %1627 = vmatprep.subr.mxu0 0.0
    %1628 = vmatpush1.msra.mxu0 %v1579
    %1629 = vmatprep.subr.mxu0 0.0
    %1630 = vmatpush1.msra.mxu0 0.0
    %1631 = vmatprep.subr.mxu0 0.0
    %1632 = vmatpush1.msra.mxu0 0.0
    %1633 = vmatprep.subr.mxu0 0.0
    %1634 = vmatpush1.msra.mxu0 0.0
    %1635 = vmatprep.subr.mxu0 0.0
    %1636 = vmatpush1.msra.mxu0 0.0
    %1637 = vmatprep.subr.mxu0 0.0
    %1638 = vmatpush1.msra.mxu0 0.0
    %1639 = vmatprep.subr.mxu0 0.0
    %1640 = vmatpush1.msra.mxu0 0.0
    %1641 = vmatprep.subr.mxu0 0.0
    %1642 = vmatpush1.msra.mxu0 0.0
    %1643 = vmatprep.subr.mxu0 0.0
    %1644 = vmatpush1.msra.mxu0 0.0
    %1645 = vmatprep.subr.mxu0 0.0
    %1646 = vmatpush1.msra.mxu0 0.0
    %1647 = vmatprep.subr.mxu0 0.0
    %1648 = vmatpush1.msra.mxu0 0.0
    %1649 = vmatprep.subr.mxu0 0.0
    %1650 = vmatpush1.msra.mxu0 0.0
    %1651 = vmatprep.subr.mxu0 0.0
    %1652 = vmatpush1.msra.mxu0 0.0
    %1653 = vmatprep.subr.mxu0 0.0
    %1654 = vmatpush1.msra.mxu0 0.0
    %1655 = vmatprep.subr.mxu0 0.0
    %1656 = vmatpush1.msra.mxu0 0.0
    %1657 = vmatprep.subr.mxu0 0.0
    %1658 = vmatpush1.msra.mxu0 0.0
    %1659 = vmatprep.subr.mxu0 0.0
    %1660 = vmatpush1.msra.mxu0 0.0
    %1661 = vmatprep.subr.mxu0 0.0
    %1662 = vmatpush1.msra.mxu0 0.0
    %1663 = vmatprep.subr.mxu0 0.0
    %1664 = vmatpush1.msra.mxu0 0.0
    %1665 = vmatprep.subr.mxu0 0.0
    %1666 = vmatpush1.msra.mxu0 0.0
    %1667 = vmatprep.subr.mxu0 0.0
    %1668 = vmatpush1.msra.mxu0 0.0
    %1669 = vmatprep.subr.mxu0 0.0
    %1670 = vmatpush1.msra.mxu0 0.0
    %1671 = vmatprep.subr.mxu0 0.0
    %1672 = vmatpush1.msra.mxu0 0.0
    %1673 = vmatprep.subr.mxu0 0.0
    %1674 = vmatpush1.msra.mxu0 0.0
    %1675 = vmatprep.subr.mxu0 0.0
    %1676 = vmatpush1.msra.mxu0 0.0
    %1677 = vmatprep.subr.mxu0 0.0
    %1678 = vmatpush1.msra.mxu0 0.0
    %1679 = vmatprep.subr.mxu0 0.0
    %1680 = vmatpush1.msra.mxu0 0.0
    %1681 = vmatprep.subr.mxu0 0.0
    %1682 = vmatpush1.msra.mxu0 0.0
    %1683 = vmatprep.subr.mxu0 0.0
    %1684 = vmatpush1.msra.mxu0 0.0
    %1685 = vmatprep.mubr.f32.mxu0 0.0
    %1686 = vmatmul.mubr.f32.gmra.mrb[0].mxu0 %v1610
    %v1687 = vpop.f32.mrb[0].mxu0
    %v1688 = vadd.f32 %v1591, %v1687
    %v1689 = vpop.f32.mrb[0].mxu0
    %1690 = vmatprep.mubr.f32.mxu0 0.0
    %1691 = vmatmul.mubr.f32.gmra.mrb[0].mxu0 %v1613
    %v1692 = vpop.f32.mrb[0].mxu0
    %v1693 = vadd.f32 %v1596, %v1692
    %v1694 = vpop.f32.mrb[0].mxu0
    %1695 = vmatprep.mubr.f32.mxu0 0.0
    %1696 = vmatmul.mubr.f32.gmra.mrb[0].mxu0 %v1616
    %v1697 = vpop.f32.mrb[0].mxu0
    %v1698 = vadd.f32 %v1601, %v1697
    %v1699 = vpop.f32.mrb[0].mxu0
    %1700 = vmatprep.mubr.f32.mxu0 0.0
    %1701 = vmatmul.mubr.f32.gmra.mrb[0].mxu0 %v1619
    %v1702 = vpop.f32.mrb[0].mxu0
    %v1703 = vadd.f32 %v1606, %v1702
    %v1704 = vpop.f32.mrb[0].mxu0
    %1705 = vdwg.mxu0
    %v1706 = vmul.f32 %v1688, 0.70710677
    %v1707 = vmul.f32 %v1693, 0.70710677
    %v1708 = vmul.f32 %v1698, 0.70710677
    %v1709 = vmul.f32 %v1703, 0.70710677
    %v1710 = verf.f32.pop %v1688
    %v1711 = verf.f32.pop %v1693
    %v1712 = verf.f32.pop %v1698
    %v1713 = verf.f32.pop %v1703
    %v1714 = vadd.f32 %v1710, 1.0
    %v1715 = vadd.f32 %v1711, 1.0
    %v1716 = vadd.f32 %v1712, 1.0
    %v1717 = vadd.f32 %v1713, 1.0
    %v1718 = vmul.f32 %v1706, %v1714
    %v1719 = vmul.f32 %v1707, %v1715
    %v1720 = vmul.f32 %v1708, %v1716
    %v1721 = vmul.f32 %v1709, %v1717
    %v1722 = vadd.f32 %v1576, %v1718
    %v1723 = vadd.f32 %v1577, %v1719
    %v1724 = vadd.f32 %v1578, %v1720
    %v1725 = vadd.f32 %v1579, %v1721
    %v1726 = vld [vmem:[%s8] sm:$0xff]
    %v1727 = vld [vmem:[%s8 + $0x8] sm:$0xff]
    %v1728 = vld [vmem:[%s8 + $0x10] sm:$0xff]
    %v1729 = vld [vmem:[%s8 + $0x18] sm:$0xff]
    %v1730 = vld [vmem:[%s9] sm:$0xff]
    %v1731 = vld [vmem:[%s9 + $0x8] sm:$0xff]
    %v1732 = vld [vmem:[%s9 + $0x10] sm:$0xff]
    %v1733 = vld [vmem:[%s9 + $0x18] sm:$0xff]
    %1735 = vset.pattern.permute.xlu0 0
    %1736 = vperm.xlu0 %1735, %v1730
    %v1737 = vpop.permute.xlu0 %1736
    %1740 = vset.pattern.permute.xlu0 0
    %1741 = vperm.xlu0 %1740, %v1731
    %v1742 = vpop.permute.xlu0 %1741
    %1745 = vset.pattern.permute.xlu0 0
    %1746 = vperm.xlu0 %1745, %v1732
    %v1747 = vpop.permute.xlu0 %1746
    %1750 = vset.pattern.permute.xlu0 0
    %1751 = vperm.xlu0 %1750, %v1733
    %v1752 = vpop.permute.xlu0 %1751
    %v1755 = vsel %vm1608, %v1726, 0
    %v1758 = vsel %vm1608, %v1727, 0
    %v1761 = vsel %vm1608, %v1728, 0
    %v1764 = vsel %vm1608, %v1729, 0
    %1766 = vmatprep.subr.mxu0 0.0
    %1767 = vmatpush1.msra.mxu0 %v1722
    %1768 = vmatprep.subr.mxu0 0.0
    %1769 = vmatpush1.msra.mxu0 %v1723
    %1770 = vmatprep.subr.mxu0 0.0
    %1771 = vmatpush1.msra.mxu0 %v1724
    %1772 = vmatprep.subr.mxu0 0.0
    %1773 = vmatpush1.msra.mxu0 %v1725
    %1774 = vmatprep.subr.mxu0 0.0
    %1775 = vmatpush1.msra.mxu0 0.0
    %1776 = vmatprep.subr.mxu0 0.0
    %1777 = vmatpush1.msra.mxu0 0.0
    %1778 = vmatprep.subr.mxu0 0.0
    %1779 = vmatpush1.msra.mxu0 0.0
    %1780 = vmatprep.subr.mxu0 0.0
    %1781 = vmatpush1.msra.mxu0 0.0
    %1782 = vmatprep.subr.mxu0 0.0
    %1783 = vmatpush1.msra.mxu0 0.0
    %1784 = vmatprep.subr.mxu0 0.0
    %1785 = vmatpush1.msra.mxu0 0.0
    %1786 = vmatprep.subr.mxu0 0.0
    %1787 = vmatpush1.msra.mxu0 0.0
    %1788 = vmatprep.subr.mxu0 0.0
    %1789 = vmatpush1.msra.mxu0 0.0
    %1790 = vmatprep.subr.mxu0 0.0
    %1791 = vmatpush1.msra.mxu0 0.0
    %1792 = vmatprep.subr.mxu0 0.0
    %1793 = vmatpush1.msra.mxu0 0.0
    %1794 = vmatprep.subr.mxu0 0.0
    %1795 = vmatpush1.msra.mxu0 0.0
    %1796 = vmatprep.subr.mxu0 0.0
    %1797 = vmatpush1.msra.mxu0 0.0
    %1798 = vmatprep.subr.mxu0 0.0
    %1799 = vmatpush1.msra.mxu0 0.0
    %1800 = vmatprep.subr.mxu0 0.0
    %1801 = vmatpush1.msra.mxu0 0.0
    %1802 = vmatprep.subr.mxu0 0.0
    %1803 = vmatpush1.msra.mxu0 0.0
    %1804 = vmatprep.subr.mxu0 0.0
    %1805 = vmatpush1.msra.mxu0 0.0
    %1806 = vmatprep.subr.mxu0 0.0
    %1807 = vmatpush1.msra.mxu0 0.0
    %1808 = vmatprep.subr.mxu0 0.0
    %1809 = vmatpush1.msra.mxu0 0.0
    %1810 = vmatprep.subr.mxu0 0.0
    %1811 = vmatpush1.msra.mxu0 0.0
    %1812 = vmatprep.subr.mxu0 0.0
    %1813 = vmatpush1.msra.mxu0 0.0
    %1814 = vmatprep.subr.mxu0 0.0
    %1815 = vmatpush1.msra.mxu0 0.0
    %1816 = vmatprep.subr.mxu0 0.0
    %1817 = vmatpush1.msra.mxu0 0.0
    %1818 = vmatprep.subr.mxu0 0.0
    %1819 = vmatpush1.msra.mxu0 0.0
    %1820 = vmatprep.subr.mxu0 0.0
    %1821 = vmatpush1.msra.mxu0 0.0
    %1822 = vmatprep.subr.mxu0 0.0
    %1823 = vmatpush1.msra.mxu0 0.0
    %1824 = vmatprep.subr.mxu0 0.0
    %1825 = vmatpush1.msra.mxu0 0.0
    %1826 = vmatprep.subr.mxu0 0.0
    %1827 = vmatpush1.msra.mxu0 0.0
    %1828 = vmatprep.subr.mxu0 0.0
    %1829 = vmatpush1.msra.mxu0 0.0
    %1830 = vmatprep.mubr.f32.mxu0 0.0
    %1831 = vmatmul.mubr.f32.gmra.mrb[0].mxu0 %v1755
    %v1832 = vpop.f32.mrb[0].mxu0
    %v1833 = vadd.f32 %v1737, %v1832
    %v1834 = vpop.f32.mrb[0].mxu0
    %1835 = vmatprep.mubr.f32.mxu0 0.0
    %1836 = vmatmul.mubr.f32.gmra.mrb[0].mxu0 %v1758
    %v1837 = vpop.f32.mrb[0].mxu0
    %v1838 = vadd.f32 %v1742, %v1837
    %v1839 = vpop.f32.mrb[0].mxu0
    %1840 = vmatprep.mubr.f32.mxu0 0.0
    %1841 = vmatmul.mubr.f32.gmra.mrb[0].mxu0 %v1761
    %v1842 = vpop.f32.mrb[0].mxu0
    %v1843 = vadd.f32 %v1747, %v1842
    %v1844 = vpop.f32.mrb[0].mxu0
    %1845 = vmatprep.mubr.f32.mxu0 0.0
    %1846 = vmatmul.mubr.f32.gmra.mrb[0].mxu0 %v1764
    %v1847 = vpop.f32.mrb[0].mxu0
    %v1848 = vadd.f32 %v1752, %v1847
    %v1849 = vpop.f32.mrb[0].mxu0
    %1850 = vdwg.mxu0
    %v1851 = vmul.f32 %v1833, 0.70710677
    %v1852 = vmul.f32 %v1838, 0.70710677
    %v1853 = vmul.f32 %v1843, 0.70710677
    %v1854 = vmul.f32 %v1848, 0.70710677
    %v1855 = verf.f32.pop %v1833
    %v1856 = verf.f32.pop %v1838
    %v1857 = verf.f32.pop %v1843
    %v1858 = verf.f32.pop %v1848
    %v1859 = vadd.f32 %v1855, 1.0
    %v1860 = vadd.f32 %v1856, 1.0
    %v1861 = vadd.f32 %v1857, 1.0
    %v1862 = vadd.f32 %v1858, 1.0
    %v1863 = vmul.f32 %v1851, %v1859
    %v1864 = vmul.f32 %v1852, %v1860
    %v1865 = vmul.f32 %v1853, %v1861
    %v1866 = vmul.f32 %v1854, %v1862
    %v1867 = vadd.f32 %v1722, %v1863
    %v1868 = vadd.f32 %v1723, %v1864
    %v1869 = vadd.f32 %v1724, %v1865
    %v1870 = vadd.f32 %v1725, %v1866
    %v1871 = vld [vmem:[%s10] sm:$0xff]
    %v1872 = vld [vmem:[%s10 + $0x8] sm:$0xff]
    %v1873 = vld [vmem:[%s10 + $0x10] sm:$0xff]
    %v1874 = vld [vmem:[%s10 + $0x18] sm:$0xff]
    %v1875 = vld [vmem:[%s11] sm:$0xff]
    %v1876 = vld [vmem:[%s11 + $0x8] sm:$0xff]
    %v1877 = vld [vmem:[%s11 + $0x10] sm:$0xff]
    %v1878 = vld [vmem:[%s11 + $0x18] sm:$0xff]
    %1880 = vset.pattern.permute.xlu0 0
    %1881 = vperm.xlu0 %1880, %v1875
    %v1882 = vpop.permute.xlu0 %1881
    %1885 = vset.pattern.permute.xlu0 0
    %1886 = vperm.xlu0 %1885, %v1876
    %v1887 = vpop.permute.xlu0 %1886
    %1890 = vset.pattern.permute.xlu0 0
    %1891 = vperm.xlu0 %1890, %v1877
    %v1892 = vpop.permute.xlu0 %1891
    %1895 = vset.pattern.permute.xlu0 0
    %1896 = vperm.xlu0 %1895, %v1878
    %v1897 = vpop.permute.xlu0 %1896
    %v1900 = vsel %vm1608, %v1871, 0
    %v1903 = vsel %vm1608, %v1872, 0
    %v1906 = vsel %vm1608, %v1873, 0
    %v1909 = vsel %vm1608, %v1874, 0
    %1911 = vmatprep.subr.mxu0 0.0
    %1912 = vmatpush1.msra.mxu0 %v1867
    %1913 = vmatprep.subr.mxu0 0.0
    %1914 = vmatpush1.msra.mxu0 %v1868
    %1915 = vmatprep.subr.mxu0 0.0
    %1916 = vmatpush1.msra.mxu0 %v1869
    %1917 = vmatprep.subr.mxu0 0.0
    %1918 = vmatpush1.msra.mxu0 %v1870
    %1919 = vmatprep.subr.mxu0 0.0
    %1920 = vmatpush1.msra.mxu0 0.0
    %1921 = vmatprep.subr.mxu0 0.0
    %1922 = vmatpush1.msra.mxu0 0.0
    %1923 = vmatprep.subr.mxu0 0.0
    %1924 = vmatpush1.msra.mxu0 0.0
    %1925 = vmatprep.subr.mxu0 0.0
    %1926 = vmatpush1.msra.mxu0 0.0
    %1927 = vmatprep.subr.mxu0 0.0
    %1928 = vmatpush1.msra.mxu0 0.0
    %1929 = vmatprep.subr.mxu0 0.0
    %1930 = vmatpush1.msra.mxu0 0.0
    %1931 = vmatprep.subr.mxu0 0.0
    %1932 = vmatpush1.msra.mxu0 0.0
    %1933 = vmatprep.subr.mxu0 0.0
    %1934 = vmatpush1.msra.mxu0 0.0
    %1935 = vmatprep.subr.mxu0 0.0
    %1936 = vmatpush1.msra.mxu0 0.0
    %1937 = vmatprep.subr.mxu0 0.0
    %1938 = vmatpush1.msra.mxu0 0.0
    %1939 = vmatprep.subr.mxu0 0.0
    %1940 = vmatpush1.msra.mxu0 0.0
    %1941 = vmatprep.subr.mxu0 0.0
    %1942 = vmatpush1.msra.mxu0 0.0
    %1943 = vmatprep.subr.mxu0 0.0
    %1944 = vmatpush1.msra.mxu0 0.0
    %1945 = vmatprep.subr.mxu0 0.0
    %1946 = vmatpush1.msra.mxu0 0.0
    %1947 = vmatprep.subr.mxu0 0.0
    %1948 = vmatpush1.msra.mxu0 0.0
    %1949 = vmatprep.subr.mxu0 0.0
    %1950 = vmatpush1.msra.mxu0 0.0
    %1951 = vmatprep.subr.mxu0 0.0
    %1952 = vmatpush1.msra.mxu0 0.0
    %1953 = vmatprep.subr.mxu0 0.0
    %1954 = vmatpush1.msra.mxu0 0.0
    %1955 = vmatprep.subr.mxu0 0.0
    %1956 = vmatpush1.msra.mxu0 0.0
    %1957 = vmatprep.subr.mxu0 0.0
    %1958 = vmatpush1.msra.mxu0 0.0
    %1959 = vmatprep.subr.mxu0 0.0
    %1960 = vmatpush1.msra.mxu0 0.0
    %1961 = vmatprep.subr.mxu0 0.0
    %1962 = vmatpush1.msra.mxu0 0.0
    %1963 = vmatprep.subr.mxu0 0.0
    %1964 = vmatpush1.msra.mxu0 0.0
    %1965 = vmatprep.subr.mxu0 0.0
    %1966 = vmatpush1.msra.mxu0 0.0
    %1967 = vmatprep.subr.mxu0 0.0
    %1968 = vmatpush1.msra.mxu0 0.0
    %1969 = vmatprep.subr.mxu0 0.0
    %1970 = vmatpush1.msra.mxu0 0.0
    %1971 = vmatprep.subr.mxu0 0.0
    %1972 = vmatpush1.msra.mxu0 0.0
    %1973 = vmatprep.subr.mxu0 0.0
    %1974 = vmatpush1.msra.mxu0 0.0
    %1975 = vmatprep.mubr.f32.mxu0 0.0
    %1976 = vmatmul.mubr.f32.gmra.mrb[0].mxu0 %v1900
    %v1977 = vpop.f32.mrb[0].mxu0
    %v1978 = vadd.f32 %v1882, %v1977
    %v1979 = vpop.f32.mrb[0].mxu0
    %1980 = vmatprep.mubr.f32.mxu0 0.0
    %1981 = vmatmul.mubr.f32.gmra.mrb[0].mxu0 %v1903
    %v1982 = vpop.f32.mrb[0].mxu0
    %v1983 = vadd.f32 %v1887, %v1982
    %v1984 = vpop.f32.mrb[0].mxu0
    %1985 = vmatprep.mubr.f32.mxu0 0.0
    %1986 = vmatmul.mubr.f32.gmra.mrb[0].mxu0 %v1906
    %v1987 = vpop.f32.mrb[0].mxu0
    %v1988 = vadd.f32 %v1892, %v1987
    %v1989 = vpop.f32.mrb[0].mxu0
    %1990 = vmatprep.mubr.f32.mxu0 0.0
    %1991 = vmatmul.mubr.f32.gmra.mrb[0].mxu0 %v1909
    %v1992 = vpop.f32.mrb[0].mxu0
    %v1993 = vadd.f32 %v1897, %v1992
    %v1994 = vpop.f32.mrb[0].mxu0
    %1995 = vdwg.mxu0
    %v1996 = vmul.f32 %v1978, 0.70710677
    %v1997 = vmul.f32 %v1983, 0.70710677
    %v1998 = vmul.f32 %v1988, 0.70710677
    %v1999 = vmul.f32 %v1993, 0.70710677
    %v2000 = verf.f32.pop %v1978
    %v2001 = verf.f32.pop %v1983
    %v2002 = verf.f32.pop %v1988
    %v2003 = verf.f32.pop %v1993
    %v2004 = vadd.f32 %v2000, 1.0
    %v2005 = vadd.f32 %v2001, 1.0
    %v2006 = vadd.f32 %v2002, 1.0
    %v2007 = vadd.f32 %v2003, 1.0
    %v2008 = vmul.f32 %v1996, %v2004
    %v2009 = vmul.f32 %v1997, %v2005
    %v2010 = vmul.f32 %v1998, %v2006
    %v2011 = vmul.f32 %v1999, %v2007
    %v2012 = vadd.f32 %v1867, %v2008
    %v2013 = vadd.f32 %v1868, %v2009
    %v2014 = vadd.f32 %v1869, %v2010
    %v2015 = vadd.f32 %v1870, %v2011
    %v2016 = vld [vmem:[%s12] sm:$0x3]
    %v2017 = vld [vmem:[%s13] sm:$0x3]
    %2019 = vset.pattern.permute.xlu0 0
    %2020 = vperm.xlu0 %2019, %v2017
    %v2021 = vpop.permute.xlu0 %2020
    %v2024 = vsel %vm1608, %v2016, 0
    %2026 = vmatprep.subr.mxu0 0.0
    %2027 = vmatpush1.msra.mxu0 %v2012
    %2028 = vmatprep.subr.mxu0 0.0
    %2029 = vmatpush1.msra.mxu0 %v2013
    %2030 = vmatprep.subr.mxu0 0.0
    %2031 = vmatpush1.msra.mxu0 %v2014
    %2032 = vmatprep.subr.mxu0 0.0
    %2033 = vmatpush1.msra.mxu0 %v2015
    %2034 = vmatprep.subr.mxu0 0.0
    %2035 = vmatpush1.msra.mxu0 0.0
    %2036 = vmatprep.subr.mxu0 0.0
    %2037 = vmatpush1.msra.mxu0 0.0
    %2038 = vmatprep.subr.mxu0 0.0
    %2039 = vmatpush1.msra.mxu0 0.0
    %2040 = vmatprep.subr.mxu0 0.0
    %2041 = vmatpush1.msra.mxu0 0.0
    %2042 = vmatprep.subr.mxu0 0.0
    %2043 = vmatpush1.msra.mxu0 0.0
    %2044 = vmatprep.subr.mxu0 0.0
    %2045 = vmatpush1.msra.mxu0 0.0
    %2046 = vmatprep.subr.mxu0 0.0
    %2047 = vmatpush1.msra.mxu0 0.0
    %2048 = vmatprep.subr.mxu0 0.0
    %2049 = vmatpush1.msra.mxu0 0.0
    %2050 = vmatprep.subr.mxu0 0.0
    %2051 = vmatpush1.msra.mxu0 0.0
    %2052 = vmatprep.subr.mxu0 0.0
    %2053 = vmatpush1.msra.mxu0 0.0
    %2054 = vmatprep.subr.mxu0 0.0
    %2055 = vmatpush1.msra.mxu0 0.0
    %2056 = vmatprep.subr.mxu0 0.0
    %2057 = vmatpush1.msra.mxu0 0.0
    %2058 = vmatprep.subr.mxu0 0.0
    %2059 = vmatpush1.msra.mxu0 0.0
    %2060 = vmatprep.subr.mxu0 0.0
    %2061 = vmatpush1.msra.mxu0 0.0
    %2062 = vmatprep.subr.mxu0 0.0
    %2063 = vmatpush1.msra.mxu0 0.0
    %2064 = vmatprep.subr.mxu0 0.0
    %2065 = vmatpush1.msra.mxu0 0.0
    %2066 = vmatprep.subr.mxu0 0.0
    %2067 = vmatpush1.msra.mxu0 0.0
    %2068 = vmatprep.subr.mxu0 0.0
    %2069 = vmatpush1.msra.mxu0 0.0
    %2070 = vmatprep.subr.mxu0 0.0
    %2071 = vmatpush1.msra.mxu0 0.0
    %2072 = vmatprep.subr.mxu0 0.0
    %2073 = vmatpush1.msra.mxu0 0.0
    %2074 = vmatprep.subr.mxu0 0.0
    %2075 = vmatpush1.msra.mxu0 0.0
    %2076 = vmatprep.subr.mxu0 0.0
    %2077 = vmatpush1.msra.mxu0 0.0
    %2078 = vmatprep.subr.mxu0 0.0
    %2079 = vmatpush1.msra.mxu0 0.0
    %2080 = vmatprep.subr.mxu0 0.0
    %2081 = vmatpush1.msra.mxu0 0.0
    %2082 = vmatprep.subr.mxu0 0.0
    %2083 = vmatpush1.msra.mxu0 0.0
    %2084 = vmatprep.subr.mxu0 0.0
    %2085 = vmatpush1.msra.mxu0 0.0
    %2086 = vmatprep.subr.mxu0 0.0
    %2087 = vmatpush1.msra.mxu0 0.0
    %2088 = vmatprep.subr.mxu0 0.0
    %2089 = vmatpush1.msra.mxu0 0.0
    %2090 = vmatprep.mubr.f32.mxu0 0.0
    %2091 = vmatmul.mubr.f32.gmra.mrb[0].mxu0 %v2024
    %v2092 = vpop.f32.mrb[0].mxu0
    %v2093 = vadd.f32 %v2021, %v2092
    %v2094 = vpop.f32.mrb[0].mxu0
    %2095 = vdwg.mxu0
    %2096 = vst [vmem:[#allocation2] sm:$0x3] %v2093
    // Predicated region
    $region58: #{tpu_custom_call.1} parent=1 // pred_check
      _
    $region59: #{tpu_custom_call.1} parent=1 // pred_check_branch
      %2098 = sbr.rel (0) target = $region61
    $region60: #{tpu_custom_call.1} parent=1 // pred_region
      %s2100 = ssub.s32 32, 32
      %2101 = vsyncadd [#allocation3], %s2100
      %s2103 = sshll.u32 [#allocation2], 4
      %s2104 = int_to_ptr.vmem [resolvable:$true] %s2103
      %2106 = dma.vmem_to_hbm [thread:$0]  %s2104, 32, %s14, [#allocation3]
    $region61: #{tpu_custom_call.1} parent=1 // pred_fallthru
      _
    // Predicated region
    $region62: #{tpu_custom_call.1} parent=1 // pred_check
      _
    $region63: #{tpu_custom_call.1} parent=1 // pred_check_branch
      %2108 = sbr.rel (0) target = $region65
    $region64: #{tpu_custom_call.1} parent=1 // pred_region
      %2109 = dma.done [#allocation3], 32
    $region65: #{tpu_custom_call.1} parent=1 // pred_fallthru
      _
    %2110 = vsyncpa [#allocation3], 1

</llo_original>
